<compile_context>
chip_gen: v7x
topology: tpu7x:2x2x1
jax: 0.10.0
libtpu: 0.0.40
codegen_flags: <defaults>
</compile_context>

<pallas_src>
import jax
import jax.numpy as jnp
from jax.experimental import pallas as pl
from jax.experimental.pallas import tpu as pltpu

CP = 128        # per-tap padded channel width (lane dense)
CLS_PAD = 128   # padded class dimension (lane-dense output stores)
NEG_INF = -1e30


def _round_up(x, m):
    return -(-x // m) * m


def make_textcnn_kernel(Ks, TB, L):
    """Fused conv(packed matmul) + ReLU + maxpool + linear + logsoftmax."""
    tap_off, t = [], 0
    for k in Ks:
        tap_off.append(t)
        t += k
    n_taps = t

    def kernel(x_ref, wpack_ref, bpack_ref, wl_ref, bl_ref, out_ref):
        x = x_ref[...]                                      # (TB, L, d)
        d = x.shape[-1]
        x2 = x.reshape(TB * L, d)

        # One matmul for every (kernel_size, tap) pair at once.
        y = jnp.dot(x2, wpack_ref[...],
                    preferred_element_type=jnp.float32)     # (TB*L, n_taps*CP)
        y = y + bpack_ref[...]                              # bias, hoisted once
        y = y.reshape(TB, L, n_taps * CP)

        feats = []
        for ki, k in enumerate(Ks):
            lout = L - k + 1
            t0 = tap_off[ki]
            acc = y[:, 0:lout, t0 * CP:(t0 + 1) * CP]
            for j in range(1, k):                           # shift-sum (VPU)
                c0 = (t0 + j) * CP
                acc = acc + y[:, j:j + lout, c0:c0 + CP]
            acc = jnp.maximum(acc, 0.0)                     # ReLU
            feats.append(jnp.max(acc, axis=1))              # max over time -> (TB, CP)

        feat = jnp.concatenate(feats, axis=1)               # (TB, n_k*CP)

        # Dropout == identity at inference.  Final Linear on the MXU.
        logits = jnp.dot(feat, wl_ref[...],
                         preferred_element_type=jnp.float32) + bl_ref[...]

        # LogSoftmax; padded classes have a -1e30 bias -> exp underflows to 0.
        m = jnp.max(logits, axis=-1, keepdims=True)
        z = logits - m
        lse = jnp.log(jnp.sum(jnp.exp(z), axis=-1, keepdims=True))
        out_ref[...] = z - lse

    return kernel


def _pack_params(params, Ks, d, Cout, num_classes, dtype):
    """Zero-pad + pack weights/biases into lane-dense (…,128) slabs."""
    n_k = len(Ks)
    n_taps = sum(Ks)

    wpack = jnp.zeros((d, n_taps * CP), jnp.float32)
    bpack = jnp.zeros((1, n_taps * CP), jnp.float32)
    t = 0
    for ki, k in enumerate(Ks):
        w = params["conv_w"][ki]                            # (k, d, Cout)
        b = params["conv_b"][ki]                            # (1, Cout)
        for j in range(k):
            wpack = wpack.at[:, t * CP:t * CP + Cout].set(w[j])
            if j == 0:
                bpack = bpack.at[:, t * CP:t * CP + Cout].set(b)
            t += 1

    wl = jnp.zeros((n_k * CP, CLS_PAD), jnp.float32)
    for ki in range(n_k):
        wl = wl.at[ki * CP:ki * CP + Cout, :num_classes].set(
            params["lin_w"][ki * Cout:(ki + 1) * Cout, :])
    bl = jnp.full((1, CLS_PAD), NEG_INF, jnp.float32)
    bl = bl.at[:, :num_classes].set(params["lin_b"])

    return wpack.astype(dtype), bpack, wl, bl


def _choose_batch_tile(B, L, d, n_pack_cols, itemsize,
                       vmem_budget_bytes=16 * 1024 * 1024):
    """Pick a batch tile that keeps the per-step working set inside VMEM."""
    # double-buffered input tile + packed f32 matmul output + shift-sum temps
    per_row = 2 * L * d * itemsize + 3 * L * n_pack_cols * 4
    tb = (vmem_budget_bytes // max(per_row, 1)) // 8 * 8
    tb = int(max(8, min(tb, 512)))
    tb = min(tb, _round_up(B, 8))
    b_pad = _round_up(B, tb)
    return tb, b_pad


def textcnn_forward(x_ids, params, cfg, compute_dtype=jnp.float32):
    """Embedding gather in plain JAX; the hot path in one Pallas kernel."""
    B, L = x_ids.shape
    d = cfg["embed_dim"]
    Cout = cfg["kernel_num"]
    Ks = [int(k) for k in cfg["kernel_sizes"].split(",")]
    num_classes = cfg["class_num"]
    n_k = len(Ks)
    n_taps = sum(Ks)
    n_pack = n_taps * CP

    assert L >= max(Ks), "sequence length must be >= max kernel size"
    assert Cout <= CP and num_classes <= CLS_PAD

    # Embedding lookup (gather) -- plain JAX glue.
    x_emb = params["embed"][x_ids].astype(compute_dtype)    # (B, L, d)

    wpack, bpack, wl, bl = _pack_params(params, Ks, d, Cout, num_classes,
                                        compute_dtype)

    TB, B_pad = _choose_batch_tile(B, L, d, n_pack,
                                   jnp.dtype(compute_dtype).itemsize)
    if B_pad != B:
        # Padded batch rows run through the kernel and are sliced off below.
        x_emb = jnp.pad(x_emb, ((0, B_pad - B), (0, 0), (0, 0)))

    kernel = make_textcnn_kernel(Ks, TB, L)

    out = pl.pallas_call(
        kernel,
        out_shape=jax.ShapeDtypeStruct((B_pad, CLS_PAD), jnp.float32),
        grid=(B_pad // TB,),
        in_specs=[
            pl.BlockSpec((TB, L, d), lambda i: (i, 0, 0)),        # activations
            pl.BlockSpec((d, n_pack), lambda i: (0, 0)),          # packed conv W
            pl.BlockSpec((1, n_pack), lambda i: (0, 0)),          # packed conv b
            pl.BlockSpec((n_k * CP, CLS_PAD), lambda i: (0, 0)),  # linear W
            pl.BlockSpec((1, CLS_PAD), lambda i: (0, 0)),         # linear b
        ],
        out_specs=pl.BlockSpec((TB, CLS_PAD), lambda i: (i, 0)),
        compiler_params=pltpu.CompilerParams(
            dimension_semantics=("parallel",),
            vmem_limit_bytes=32 * 1024 * 1024),
    )(x_emb, wpack, bpack, wl, bl)

    return out[:B, :num_classes]


def init_params(cfg, key):
    """Deterministic synthetic parameter init matching the module shapes."""
    d = cfg["embed_dim"]
    V = cfg["vocab_size"]
    Cout = cfg["kernel_num"]
    Ks = [int(k) for k in cfg["kernel_sizes"].split(",")]
    num_classes = cfg["class_num"]

    keys = jax.random.split(key, 3 + 2 * len(Ks))
    params = {}
    params["embed"] = jax.random.normal(keys[0], (V, d), jnp.float32)

    conv_w, conv_b = [], []
    for i, k in enumerate(Ks):
        n = k * d * Cout
        std = jnp.sqrt(2.0 / n)
        # PyTorch conv weight is (Cout, 1, k, d); stored here as (k, d, Cout).
        w = jax.random.normal(keys[1 + 2 * i], (k, d, Cout), jnp.float32) * std
        b = jax.random.normal(keys[2 + 2 * i], (1, Cout), jnp.float32) * 0.01
        conv_w.append(w)
        conv_b.append(b)
    params["conv_w"] = conv_w
    params["conv_b"] = conv_b

    fan_in = len(Ks) * Cout
    bound = 1.0 / jnp.sqrt(fan_in)
    params["lin_w"] = jax.random.uniform(
        keys[-2], (fan_in, num_classes), jnp.float32, -bound, bound)
    params["lin_b"] = jax.random.uniform(
        keys[-1], (1, num_classes), jnp.float32, -bound, bound)
    return params


def reference_forward(x_ids, params, cfg):
    """Pure-JAX reference for the numerical check."""
    Ks = [int(k) for k in cfg["kernel_sizes"].split(",")]
    x = params["embed"][x_ids].astype(jnp.float32)          # (B, L, d)
    B, L, _ = x.shape
    feats = []
    for ki, k in enumerate(Ks):
        w = params["conv_w"][ki]                            # (k, d, Cout)
        b = params["conv_b"][ki]                            # (1, Cout)
        Lout = L - k + 1
        acc = sum(jnp.einsum("bld,dc->blc", x[:, j:j + Lout, :], w[j])
                  for j in range(k)) + b[None, :, :]
        feats.append(jnp.max(jnp.maximum(acc, 0.0), axis=1))
    feat = jnp.concatenate(feats, axis=1)
    logits = feat @ params["lin_w"] + params["lin_b"]
    return jax.nn.log_softmax(logits, axis=-1)


if __name__ == "__main__":
    cfg = {
        "vocab_size": 50,
        "embed_dim": 32,
        "kernel_num": 8,
        "kernel_sizes": "2,3,4",
        "class_num": 5,
        "dropout": 0.5,
        "static": False,
        "multichannel": False,
    }
    B, L = 2, 16

    key = jax.random.PRNGKey(0)
    k_ids, k_params = jax.random.split(key)
    x_ids = jax.random.randint(k_ids, (B, L), 0, cfg["vocab_size"], jnp.int32)
    params = init_params(cfg, k_params)

    # TODO(synk): for v6e/v7x serving, pass compute_dtype=jnp.bfloat16 to halve
    # HBM traffic (accumulation stays f32); kept f32 here for the strict check.
    out = textcnn_forward(x_ids, params, cfg)
    out = jax.block_until_ready(out)

    ref = reference_forward(x_ids, params, cfg)
    assert out.shape == (B, cfg["class_num"])
    assert jnp.allclose(out, ref, atol=1e-4, rtol=1e-4), "mismatch vs reference"

    print("KERNEL_OK")
</pallas_src>

<mosaic_0001>
module attributes {stable_mosaic.version = 11 : i64} {
  func.func @kernel(%arg0: i32, %arg1: memref<8x16x32xf32, #tpu.memory_space<vmem>>, %arg2: memref<32x1152xf32, #tpu.memory_space<vmem>>, %arg3: memref<1x1152xf32, #tpu.memory_space<vmem>>, %arg4: memref<384x128xf32, #tpu.memory_space<vmem>>, %arg5: memref<1x128xf32, #tpu.memory_space<vmem>>, %arg6: memref<8x128xf32, #tpu.memory_space<vmem>>) attributes {dimension_semantics = [#tpu.dimension_semantics<parallel>], iteration_bounds = array<i64: 1>, scalar_prefetch = 0 : i64, scratch_operands = 0 : i64, tpu.core_type = #tpu.core_type<tc>, window_params = [{transform_indices = @transform_0, window_bounds = array<i64: 8, 16, 32>}, {pipeline_mode = #tpu.pipeline_mode<synchronous>, transform_indices = @transform_1, window_bounds = array<i64: 32, 1152>}, {pipeline_mode = #tpu.pipeline_mode<synchronous>, transform_indices = @transform_2, window_bounds = array<i64: 1, 1152>}, {pipeline_mode = #tpu.pipeline_mode<synchronous>, transform_indices = @transform_3, window_bounds = array<i64: 384, 128>}, {pipeline_mode = #tpu.pipeline_mode<synchronous>, transform_indices = @transform_4, window_bounds = array<i64: 1, 128>}, {transform_indices = @transform_5, window_bounds = array<i64: 8, 128>}]} {
    %c0 = arith.constant 0 : index
    %c0_0 = arith.constant 0 : index
    %c0_1 = arith.constant 0 : index
    %0 = vector.load %arg1[%c0, %c0_0, %c0_1] : memref<8x16x32xf32, #tpu.memory_space<vmem>>, vector<8x16x32xf32>
    %1 = vector.shape_cast %0 : vector<8x16x32xf32> to vector<128x32xf32>
    %c0_2 = arith.constant 0 : index
    %c0_3 = arith.constant 0 : index
    %2 = vector.load %arg2[%c0_2, %c0_3] : memref<32x1152xf32, #tpu.memory_space<vmem>>, vector<32x1152xf32>
    %cst = arith.constant dense<0.000000e+00> : vector<128x1152xf32>
    %3 = tpu.matmul %1, %2, %cst {dimension_numbers = #tpu.dot_dimension_numbers<[1], [0], [0], [1], [0, 0, 1, 1], [], []>} : vector<128x32xf32>, vector<32x1152xf32>, vector<128x1152xf32> -> vector<128x1152xf32>
    %c0_4 = arith.constant 0 : index
    %c0_5 = arith.constant 0 : index
    %4 = vector.load %arg3[%c0_4, %c0_5] : memref<1x1152xf32, #tpu.memory_space<vmem>>, vector<1x1152xf32>
    %5 = vector.broadcast %4 : vector<1x1152xf32> to vector<128x1152xf32>
    %6 = arith.addf %3, %5 : vector<128x1152xf32>
    %7 = vector.shape_cast %6 : vector<128x1152xf32> to vector<8x16x1152xf32>
    %8 = vector.extract_strided_slice %7 {offsets = [0, 0, 0], sizes = [8, 15, 128], strides = [1, 1, 1]} : vector<8x16x1152xf32> to vector<8x15x128xf32>
    %9 = vector.extract_strided_slice %7 {offsets = [0, 1, 128], sizes = [8, 15, 128], strides = [1, 1, 1]} : vector<8x16x1152xf32> to vector<8x15x128xf32>
    %10 = arith.addf %8, %9 : vector<8x15x128xf32>
    %cst_6 = arith.constant 0.000000e+00 : f32
    %11 = vector.broadcast %cst_6 : f32 to vector<8x15x128xf32>
    %12 = arith.maximumf %10, %11 : vector<8x15x128xf32>
    %cst_7 = arith.constant dense<0xFF800000> : vector<8x128xf32>
    %13 = vector.multi_reduction <maximumf>, %12, %cst_7 [1] : vector<8x15x128xf32> to vector<8x128xf32>
    %14 = vector.extract_strided_slice %7 {offsets = [0, 0, 256], sizes = [8, 14, 128], strides = [1, 1, 1]} : vector<8x16x1152xf32> to vector<8x14x128xf32>
    %15 = vector.extract_strided_slice %7 {offsets = [0, 1, 384], sizes = [8, 14, 128], strides = [1, 1, 1]} : vector<8x16x1152xf32> to vector<8x14x128xf32>
    %16 = arith.addf %14, %15 : vector<8x14x128xf32>
    %17 = vector.extract_strided_slice %7 {offsets = [0, 2, 512], sizes = [8, 14, 128], strides = [1, 1, 1]} : vector<8x16x1152xf32> to vector<8x14x128xf32>
    %18 = arith.addf %16, %17 : vector<8x14x128xf32>
    %cst_8 = arith.constant 0.000000e+00 : f32
    %19 = vector.broadcast %cst_8 : f32 to vector<8x14x128xf32>
    %20 = arith.maximumf %18, %19 : vector<8x14x128xf32>
    %cst_9 = arith.constant dense<0xFF800000> : vector<8x128xf32>
    %21 = vector.multi_reduction <maximumf>, %20, %cst_9 [1] : vector<8x14x128xf32> to vector<8x128xf32>
    %22 = vector.extract_strided_slice %7 {offsets = [0, 0, 640], sizes = [8, 13, 128], strides = [1, 1, 1]} : vector<8x16x1152xf32> to vector<8x13x128xf32>
    %23 = vector.extract_strided_slice %7 {offsets = [0, 1, 768], sizes = [8, 13, 128], strides = [1, 1, 1]} : vector<8x16x1152xf32> to vector<8x13x128xf32>
    %24 = arith.addf %22, %23 : vector<8x13x128xf32>
    %25 = vector.extract_strided_slice %7 {offsets = [0, 2, 896], sizes = [8, 13, 128], strides = [1, 1, 1]} : vector<8x16x1152xf32> to vector<8x13x128xf32>
    %26 = arith.addf %24, %25 : vector<8x13x128xf32>
    %27 = vector.extract_strided_slice %7 {offsets = [0, 3, 1024], sizes = [8, 13, 128], strides = [1, 1, 1]} : vector<8x16x1152xf32> to vector<8x13x128xf32>
    %28 = arith.addf %26, %27 : vector<8x13x128xf32>
    %cst_10 = arith.constant 0.000000e+00 : f32
    %29 = vector.broadcast %cst_10 : f32 to vector<8x13x128xf32>
    %30 = arith.maximumf %28, %29 : vector<8x13x128xf32>
    %cst_11 = arith.constant dense<0xFF800000> : vector<8x128xf32>
    %31 = vector.multi_reduction <maximumf>, %30, %cst_11 [1] : vector<8x13x128xf32> to vector<8x128xf32>
    %32 = tpu.concatenate %13, %21, %31 in 1 : vector<8x128xf32>, vector<8x128xf32>, vector<8x128xf32> -> vector<8x384xf32>
    %c0_12 = arith.constant 0 : index
    %c0_13 = arith.constant 0 : index
    %33 = vector.load %arg4[%c0_12, %c0_13] : memref<384x128xf32, #tpu.memory_space<vmem>>, vector<384x128xf32>
    %cst_14 = arith.constant dense<0.000000e+00> : vector<8x128xf32>
    %34 = tpu.matmul %32, %33, %cst_14 {dimension_numbers = #tpu.dot_dimension_numbers<[1], [0], [0], [1], [0, 0, 1, 1], [], []>} : vector<8x384xf32>, vector<384x128xf32>, vector<8x128xf32> -> vector<8x128xf32>
    %c0_15 = arith.constant 0 : index
    %c0_16 = arith.constant 0 : index
    %35 = vector.load %arg5[%c0_15, %c0_16] : memref<1x128xf32, #tpu.memory_space<vmem>>, vector<1x128xf32>
    %36 = vector.broadcast %35 : vector<1x128xf32> to vector<8x128xf32>
    %37 = arith.addf %34, %36 : vector<8x128xf32>
    %cst_17 = arith.constant dense<0xFF800000> : vector<8xf32>
    %38 = vector.multi_reduction <maximumf>, %37, %cst_17 [1] : vector<8x128xf32> to vector<8xf32>
    %39 = vector.shape_cast %38 : vector<8xf32> to vector<8x1xf32>
    %40 = vector.broadcast %39 : vector<8x1xf32> to vector<8x128xf32>
    %41 = arith.subf %37, %40 : vector<8x128xf32>
    %42 = math.exp %41 : vector<8x128xf32>
    %cst_18 = arith.constant dense<0.000000e+00> : vector<8xf32>
    %43 = vector.multi_reduction <add>, %42, %cst_18 [1] : vector<8x128xf32> to vector<8xf32>
    %44 = vector.shape_cast %43 : vector<8xf32> to vector<8x1xf32>
    %45 = math.log %44 : vector<8x1xf32>
    %46 = vector.broadcast %45 : vector<8x1xf32> to vector<8x128xf32>
    %47 = arith.subf %41, %46 : vector<8x128xf32>
    %c0_19 = arith.constant 0 : index
    %c0_20 = arith.constant 0 : index
    %48 = vector.load %arg6[%c0_19, %c0_20] : memref<8x128xf32, #tpu.memory_space<vmem>>, vector<8x128xf32>
    tpu.vector_store %arg6[%c0_19, %c0_20], %47 {strides = array<i32>} : memref<8x128xf32, #tpu.memory_space<vmem>>, vector<8x128xf32>,
    return
  }
  func.func @transform_0(%arg0: i32) -> (i32, i32, i32) {
    %c0_i32 = arith.constant 0 : i32
    %c0_i32_0 = arith.constant 0 : i32
    %c0_i32_1 = arith.constant 0 : i32
    return %arg0, %c0_i32, %c0_i32_0 : i32, i32, i32
  }
  func.func @transform_1(%arg0: i32) -> (i32, i32) {
    %c0_i32 = arith.constant 0 : i32
    %c0_i32_0 = arith.constant 0 : i32
    %c0_i32_1 = arith.constant 0 : i32
    return %c0_i32, %c0_i32_0 : i32, i32
  }
  func.func @transform_2(%arg0: i32) -> (i32, i32) {
    %c0_i32 = arith.constant 0 : i32
    %c0_i32_0 = arith.constant 0 : i32
    %c0_i32_1 = arith.constant 0 : i32
    return %c0_i32, %c0_i32_0 : i32, i32
  }
  func.func @transform_3(%arg0: i32) -> (i32, i32) {
    %c0_i32 = arith.constant 0 : i32
    %c0_i32_0 = arith.constant 0 : i32
    %c0_i32_1 = arith.constant 0 : i32
    return %c0_i32, %c0_i32_0 : i32, i32
  }
  func.func @transform_4(%arg0: i32) -> (i32, i32) {
    %c0_i32 = arith.constant 0 : i32
    %c0_i32_0 = arith.constant 0 : i32
    %c0_i32_1 = arith.constant 0 : i32
    return %c0_i32, %c0_i32_0 : i32, i32
  }
  func.func @transform_5(%arg0: i32) -> (i32, i32) {
    %c0_i32 = arith.constant 0 : i32
    %c0_i32_0 = arith.constant 0 : i32
    return %arg0, %c0_i32 : i32, i32
  }
}

</mosaic_0001>

<llo_original>
// kernel: tpu_custom_call.1
$region0: #{tpu_custom_call.1}
  #allocation0 [shape = 'u32[]', space=smem, size = 0x4, offset = 0x4, fixed_abs, tag = 'smem constant byte address 0x4 - core index']
  #allocation1 [shape = 'u32[144,128]{1,0:T(1,128)}', space=vmem, size = 0x12000, scoped, tag = 'internal scratch']
  %s0 = inlined_call_operand.hbm [shape: f32[8,16,32], index: 0, kind: input, shape index: {}]
  %s1 = inlined_call_operand.hbm [shape: f32[32,1152], index: 1, kind: input, shape index: {}]
  %s2 = inlined_call_operand.hbm [shape: f32[1,1152], index: 2, kind: input, shape index: {}]
  %s3 = inlined_call_operand.hbm [shape: f32[384,128], index: 3, kind: input, shape index: {}]
  %s4 = inlined_call_operand.vmem [shape: f32[1,128], index: 4, kind: input, shape index: {}]
  %s5 = inlined_call_operand.hbm [shape: f32[8,128], index: 5, kind: output, shape index: {}]
  %s6 = sld [smem:[#allocation0]]
  $region46: #{tpu_custom_call.1} parent=0
    _
  %s8 = ssub.s32 1, %s6
  %s9 = scalar_select 0, %s8, %s6
  $region1: #{tpu_custom_call.1} parent=0
    #allocation2 [shape = 'u8[65536]{0}', space=vmem, size = 0x10000, scoped, tag = 'input window, operand 0, single buffered']
    #allocation3 [shape = 's32[1]{0}', space=sflag, size = 0x4, scoped, tag = 'scoped memory for tpu_custom_call.1']
    #allocation4 [shape = 's32[1]{0}', space=sflag, size = 0x4, scoped, tag = 'scoped memory for tpu_custom_call.1']
    #allocation5 [shape = 'u8[147456]{0}', space=vmem, size = 0x24000, scoped, tag = 'input window, operand 1, single buffered']
    #allocation6 [shape = 's32[1]{0}', space=sflag, size = 0x4, scoped, tag = 'scoped memory for tpu_custom_call.1']
    #allocation7 [shape = 'u8[4608]{0}', space=vmem, size = 0x1400, scoped, tag = 'input window, operand 2, single buffered']
    #allocation8 [shape = 'u8[196608]{0}', space=vmem, size = 0x30000, scoped, tag = 'input window, operand 3, single buffered']
    #allocation9 [shape = 's32[1]{0}', space=sflag, size = 0x4, scoped, tag = 'scoped memory for tpu_custom_call.1']
    #allocation10 [shape = 'u8[4096]{0}', space=vmem, size = 0x1000, scoped, tag = 'output window, operand 0, single buffered']
    %10 = vsyncpa [#allocation3], 0
    %11 = vsyncpa [#allocation6], 0
    %12 = vsyncpa [#allocation9], 0
    %13 = vsyncpa [#allocation4], 0
    // Predicated region
    $region2: #{tpu_custom_call.1} parent=1 // pred_check
      _
    $region3: #{tpu_custom_call.1} parent=1 // pred_check_branch
      %15 = sbr.rel (0) target = $region5
    $region4: #{tpu_custom_call.1} parent=1 // pred_region
      %s17 = ssub.s32 2048, 2048
      %18 = vsyncadd [#allocation3], %s17
      %s19 = sshll.u32 [#allocation2], 4
      %s20 = int_to_ptr.vmem [resolvable:$true] %s19
      %25 = dma.hbm_to_vmem [thread:$0]  %s0, 2048, %s20, [#allocation3], 128, 128, 8
    $region5: #{tpu_custom_call.1} parent=1 // pred_fallthru
      _
    // Predicated region
    $region6: #{tpu_custom_call.1} parent=1 // pred_check
      _
    $region7: #{tpu_custom_call.1} parent=1 // pred_check_branch
      %27 = sbr.rel (0) target = $region9
    $region8: #{tpu_custom_call.1} parent=1 // pred_region
      %s29 = ssub.s32 4608, 4608
      %30 = vsyncadd [#allocation6], %s29
      %s31 = sshll.u32 [#allocation5], 4
      %s32 = int_to_ptr.vmem [resolvable:$true] %s31
      %37 = dma.hbm_to_vmem [thread:$0]  %s1, 4608, %s32, [#allocation6], 1152, 1152, 72
    $region9: #{tpu_custom_call.1} parent=1 // pred_fallthru
      _
    // Predicated region
    $region10: #{tpu_custom_call.1} parent=1 // pred_check
      _
    $region11: #{tpu_custom_call.1} parent=1 // pred_check_branch
      %39 = sbr.rel (0) target = $region13
    $region12: #{tpu_custom_call.1} parent=1 // pred_region
      %s41 = ssub.s32 144, 144
      %42 = vsyncadd [#allocation6], %s41
      %s44 = sshll.u32 [#allocation7], 4
      %s45 = int_to_ptr.vmem [resolvable:$true] %s44
      %47 = dma.hbm_to_vmem [thread:$0]  %s2, 144, %s45, [#allocation6]
    $region13: #{tpu_custom_call.1} parent=1 // pred_fallthru
      _
    // Predicated region
    $region14: #{tpu_custom_call.1} parent=1 // pred_check
      _
    $region15: #{tpu_custom_call.1} parent=1 // pred_check_branch
      %49 = sbr.rel (0) target = $region17
    $region16: #{tpu_custom_call.1} parent=1 // pred_region
      %s51 = ssub.s32 6144, 6144
      %52 = vsyncadd [#allocation9], %s51
      %s53 = sshll.u32 [#allocation8], 4
      %s54 = int_to_ptr.vmem [resolvable:$true] %s53
      %59 = dma.hbm_to_vmem [thread:$0]  %s3, 6144, %s54, [#allocation9], 128, 128, 8
    $region17: #{tpu_custom_call.1} parent=1 // pred_fallthru
      _
    // Predicated region
    $region18: #{tpu_custom_call.1} parent=1 // pred_check
      _
    $region19: #{tpu_custom_call.1} parent=1 // pred_check_branch
      %61 = sbr.rel (0) target = $region21
    $region20: #{tpu_custom_call.1} parent=1 // pred_region
      _
    $region21: #{tpu_custom_call.1} parent=1 // pred_fallthru
      _
    // Predicated region
    $region22: #{tpu_custom_call.1} parent=1 // pred_check
      _
    $region23: #{tpu_custom_call.1} parent=1 // pred_check_branch
      %63 = sbr.rel (0) target = $region25
    $region24: #{tpu_custom_call.1} parent=1 // pred_region
      %64 = dma.done [#allocation3], 2048
    $region25: #{tpu_custom_call.1} parent=1 // pred_fallthru
      _
    // Predicated region
    $region26: #{tpu_custom_call.1} parent=1 // pred_check
      _
    $region27: #{tpu_custom_call.1} parent=1 // pred_check_branch
      %66 = sbr.rel (0) target = $region29
    $region28: #{tpu_custom_call.1} parent=1 // pred_region
      %67 = dma.done [#allocation6], 4608
    $region29: #{tpu_custom_call.1} parent=1 // pred_fallthru
      _
    // Predicated region
    $region30: #{tpu_custom_call.1} parent=1 // pred_check
      _
    $region31: #{tpu_custom_call.1} parent=1 // pred_check_branch
      %69 = sbr.rel (0) target = $region33
    $region32: #{tpu_custom_call.1} parent=1 // pred_region
      %70 = dma.done [#allocation6], 144
    $region33: #{tpu_custom_call.1} parent=1 // pred_fallthru
      _
    // Predicated region
    $region34: #{tpu_custom_call.1} parent=1 // pred_check
      _
    $region35: #{tpu_custom_call.1} parent=1 // pred_check_branch
      %72 = sbr.rel (0) target = $region37
    $region36: #{tpu_custom_call.1} parent=1 // pred_region
      %73 = dma.done [#allocation9], 6144
    $region37: #{tpu_custom_call.1} parent=1 // pred_fallthru
      _
    %v74 = vld [vmem:[#allocation2] sm:$0xff]
    %v75 = vld [vmem:[#allocation2 + $0x8] sm:$0xff]
    %v76 = vld [vmem:[#allocation2 + $0x10] sm:$0xff]
    %v77 = vld [vmem:[#allocation2 + $0x18] sm:$0xff]
    %v78 = vld [vmem:[#allocation2 + $0x20] sm:$0xff]
    %v79 = vld [vmem:[#allocation2 + $0x28] sm:$0xff]
    %v80 = vld [vmem:[#allocation2 + $0x30] sm:$0xff]
    %v81 = vld [vmem:[#allocation2 + $0x38] sm:$0xff]
    %v82 = vld [vmem:[#allocation2 + $0x40] sm:$0xff]
    %v83 = vld [vmem:[#allocation2 + $0x48] sm:$0xff]
    %v84 = vld [vmem:[#allocation2 + $0x50] sm:$0xff]
    %v85 = vld [vmem:[#allocation2 + $0x58] sm:$0xff]
    %v86 = vld [vmem:[#allocation2 + $0x60] sm:$0xff]
    %v87 = vld [vmem:[#allocation2 + $0x68] sm:$0xff]
    %v88 = vld [vmem:[#allocation2 + $0x70] sm:$0xff]
    %v89 = vld [vmem:[#allocation2 + $0x78] sm:$0xff]
    %v90 = vld [vmem:[#allocation5] sm:$0xff]
    %v91 = vld [vmem:[#allocation5 + $0x8] sm:$0xff]
    %v92 = vld [vmem:[#allocation5 + $0x10] sm:$0xff]
    %v93 = vld [vmem:[#allocation5 + $0x18] sm:$0xff]
    %v94 = vld [vmem:[#allocation5 + $0x20] sm:$0xff]
    %v95 = vld [vmem:[#allocation5 + $0x28] sm:$0xff]
    %v96 = vld [vmem:[#allocation5 + $0x30] sm:$0xff]
    %v97 = vld [vmem:[#allocation5 + $0x38] sm:$0xff]
    %v98 = vld [vmem:[#allocation5 + $0x40] sm:$0xff]
    %v99 = vld [vmem:[#allocation5 + $0x48] sm:$0xff]
    %v100 = vld [vmem:[#allocation5 + $0x50] sm:$0xff]
    %v101 = vld [vmem:[#allocation5 + $0x58] sm:$0xff]
    %v102 = vld [vmem:[#allocation5 + $0x60] sm:$0xff]
    %v103 = vld [vmem:[#allocation5 + $0x68] sm:$0xff]
    %v104 = vld [vmem:[#allocation5 + $0x70] sm:$0xff]
    %v105 = vld [vmem:[#allocation5 + $0x78] sm:$0xff]
    %v106 = vld [vmem:[#allocation5 + $0x80] sm:$0xff]
    %v107 = vld [vmem:[#allocation5 + $0x88] sm:$0xff]
    %v108 = vld [vmem:[#allocation5 + $0x90] sm:$0xff]
    %v109 = vld [vmem:[#allocation5 + $0x98] sm:$0xff]
    %v110 = vld [vmem:[#allocation5 + $0xa0] sm:$0xff]
    %v111 = vld [vmem:[#allocation5 + $0xa8] sm:$0xff]
    %v112 = vld [vmem:[#allocation5 + $0xb0] sm:$0xff]
    %v113 = vld [vmem:[#allocation5 + $0xb8] sm:$0xff]
    %v114 = vld [vmem:[#allocation5 + $0xc0] sm:$0xff]
    %v115 = vld [vmem:[#allocation5 + $0xc8] sm:$0xff]
    %v116 = vld [vmem:[#allocation5 + $0xd0] sm:$0xff]
    %v117 = vld [vmem:[#allocation5 + $0xd8] sm:$0xff]
    %v118 = vld [vmem:[#allocation5 + $0xe0] sm:$0xff]
    %v119 = vld [vmem:[#allocation5 + $0xe8] sm:$0xff]
    %v120 = vld [vmem:[#allocation5 + $0xf0] sm:$0xff]
    %v121 = vld [vmem:[#allocation5 + $0xf8] sm:$0xff]
    %v122 = vld [vmem:[#allocation5 + $0x100] sm:$0xff]
    %v123 = vld [vmem:[#allocation5 + $0x108] sm:$0xff]
    %v124 = vld [vmem:[#allocation5 + $0x110] sm:$0xff]
    %v125 = vld [vmem:[#allocation5 + $0x118] sm:$0xff]
    %v126 = vld [vmem:[#allocation7] sm:$0xff]
    %v127 = vld [vmem:[#allocation7 + $0x8] sm:$0x1]
    %v130 = vlaneseq
    %v131 = vshrl.u32 %v130, 7
    %v132 = vsub.s32 0, %v131
    %v133 = vrot.slane %v126, %v132
    %v134 = vlaneseq
    %v135 = vshrl.u32 %v134, 7
    %v136 = vsub.s32 1, %v135
    %v137 = vrot.slane %v126, %v136
    %v138 = vlaneseq
    %v139 = vshrl.u32 %v138, 7
    %v140 = vsub.s32 2, %v139
    %v141 = vrot.slane %v126, %v140
    %v142 = vlaneseq
    %v143 = vshrl.u32 %v142, 7
    %v144 = vsub.s32 3, %v143
    %v145 = vrot.slane %v126, %v144
    %v146 = vlaneseq
    %v147 = vshrl.u32 %v146, 7
    %v148 = vsub.s32 4, %v147
    %v149 = vrot.slane %v126, %v148
    %v150 = vlaneseq
    %v151 = vshrl.u32 %v150, 7
    %v152 = vsub.s32 5, %v151
    %v153 = vrot.slane %v126, %v152
    %v154 = vlaneseq
    %v155 = vshrl.u32 %v154, 7
    %v156 = vsub.s32 6, %v155
    %v157 = vrot.slane %v126, %v156
    %v158 = vlaneseq
    %v159 = vshrl.u32 %v158, 7
    %v160 = vsub.s32 7, %v159
    %v161 = vrot.slane %v126, %v160
    %v162 = vlaneseq
    %v163 = vshrl.u32 %v162, 7
    %v164 = vsub.s32 0, %v163
    %v165 = vrot.slane %v127, %v164
    %vm175 = vcmask 261120
    %v177 = vsel %vm175, %v74, 0
    %v180 = vsel %vm175, %v75, 0
    %v183 = vsel %vm175, %v76, 0
    %v186 = vsel %vm175, %v77, 0
    %v189 = vsel %vm175, %v78, 0
    %v192 = vsel %vm175, %v79, 0
    %v195 = vsel %vm175, %v80, 0
    %v198 = vsel %vm175, %v81, 0
    %v201 = vsel %vm175, %v82, 0
    %v204 = vsel %vm175, %v83, 0
    %v207 = vsel %vm175, %v84, 0
    %v210 = vsel %vm175, %v85, 0
    %v213 = vsel %vm175, %v86, 0
    %v216 = vsel %vm175, %v87, 0
    %v219 = vsel %vm175, %v88, 0
    %v222 = vsel %vm175, %v89, 0
    %224 = vmatprep.subr.mxu0 %v91
    %225 = vmatpush1.msra.mxu0 %v90
    %226 = vmatprep.subr.mxu0 %v100
    %227 = vmatpush1.msra.mxu0 %v99
    %228 = vmatprep.subr.mxu0 %v109
    %229 = vmatpush1.msra.mxu0 %v108
    %230 = vmatprep.subr.mxu0 %v118
    %231 = vmatpush1.msra.mxu0 %v117
    %232 = vmatprep.subr.mxu0 0.0
    %233 = vmatpush1.msra.mxu0 0.0
    %234 = vmatprep.subr.mxu0 0.0
    %235 = vmatpush1.msra.mxu0 0.0
    %236 = vmatprep.subr.mxu0 0.0
    %237 = vmatpush1.msra.mxu0 0.0
    %238 = vmatprep.subr.mxu0 0.0
    %239 = vmatpush1.msra.mxu0 0.0
    %240 = vmatprep.subr.mxu0 0.0
    %241 = vmatpush1.msra.mxu0 0.0
    %242 = vmatprep.subr.mxu0 0.0
    %243 = vmatpush1.msra.mxu0 0.0
    %244 = vmatprep.subr.mxu0 0.0
    %245 = vmatpush1.msra.mxu0 0.0
    %246 = vmatprep.subr.mxu0 0.0
    %247 = vmatpush1.msra.mxu0 0.0
    %248 = vmatprep.subr.mxu0 0.0
    %249 = vmatpush1.msra.mxu0 0.0
    %250 = vmatprep.subr.mxu0 0.0
    %251 = vmatpush1.msra.mxu0 0.0
    %252 = vmatprep.subr.mxu0 0.0
    %253 = vmatpush1.msra.mxu0 0.0
    %254 = vmatprep.subr.mxu0 0.0
    %255 = vmatpush1.msra.mxu0 0.0
    %256 = vmatprep.subr.mxu0 0.0
    %257 = vmatpush1.msra.mxu0 0.0
    %258 = vmatprep.subr.mxu0 0.0
    %259 = vmatpush1.msra.mxu0 0.0
    %260 = vmatprep.subr.mxu0 0.0
    %261 = vmatpush1.msra.mxu0 0.0
    %262 = vmatprep.subr.mxu0 0.0
    %263 = vmatpush1.msra.mxu0 0.0
    %264 = vmatprep.subr.mxu0 0.0
    %265 = vmatpush1.msra.mxu0 0.0
    %266 = vmatprep.subr.mxu0 0.0
    %267 = vmatpush1.msra.mxu0 0.0
    %268 = vmatprep.subr.mxu0 0.0
    %269 = vmatpush1.msra.mxu0 0.0
    %270 = vmatprep.subr.mxu0 0.0
    %271 = vmatpush1.msra.mxu0 0.0
    %272 = vmatprep.subr.mxu0 0.0
    %273 = vmatpush1.msra.mxu0 0.0
    %274 = vmatprep.subr.mxu0 0.0
    %275 = vmatpush1.msra.mxu0 0.0
    %276 = vmatprep.subr.mxu0 0.0
    %277 = vmatpush1.msra.mxu0 0.0
    %278 = vmatprep.subr.mxu0 0.0
    %279 = vmatpush1.msra.mxu0 0.0
    %280 = vmatprep.subr.mxu0 0.0
    %281 = vmatpush1.msra.mxu0 0.0
    %282 = vmatprep.subr.mxu0 0.0
    %283 = vmatpush1.msra.mxu0 0.0
    %284 = vmatprep.subr.mxu0 0.0
    %285 = vmatpush1.msra.mxu0 0.0
    %286 = vmatprep.subr.mxu0 0.0
    %287 = vmatpush1.msra.mxu0 0.0
    %288 = vmatprep.mubr.f32.mxu0 0.0
    %289 = vmatmul.mubr.f32.gmra.mrb[0].mxu0 %v177
    %v290 = vpop.f32.mrb[0].mxu0
    %v291 = vadd.f32 %v133, %v290
    %v292 = vpop.f32.mrb[0].mxu0
    %v293 = vadd.f32 %v137, %v292
    %294 = vmatprep.mubr.f32.mxu0 0.0
    %295 = vmatmul.mubr.f32.gmra.mrb[0].mxu0 %v180
    %v296 = vpop.f32.mrb[0].mxu0
    %v297 = vadd.f32 %v133, %v296
    %v298 = vpop.f32.mrb[0].mxu0
    %v299 = vadd.f32 %v137, %v298
    %300 = vmatprep.mubr.f32.mxu0 0.0
    %301 = vmatmul.mubr.f32.gmra.mrb[0].mxu0 %v183
    %v302 = vpop.f32.mrb[0].mxu0
    %v303 = vadd.f32 %v133, %v302
    %v304 = vpop.f32.mrb[0].mxu0
    %v305 = vadd.f32 %v137, %v304
    %306 = vmatprep.mubr.f32.mxu0 0.0
    %307 = vmatmul.mubr.f32.gmra.mrb[0].mxu0 %v186
    %v308 = vpop.f32.mrb[0].mxu0
    %v309 = vadd.f32 %v133, %v308
    %v310 = vpop.f32.mrb[0].mxu0
    %v311 = vadd.f32 %v137, %v310
    %312 = vmatprep.mubr.f32.mxu0 0.0
    %313 = vmatmul.mubr.f32.gmra.mrb[0].mxu0 %v189
    %v314 = vpop.f32.mrb[0].mxu0
    %v315 = vadd.f32 %v133, %v314
    %v316 = vpop.f32.mrb[0].mxu0
    %v317 = vadd.f32 %v137, %v316
    %318 = vmatprep.mubr.f32.mxu0 0.0
    %319 = vmatmul.mubr.f32.gmra.mrb[0].mxu0 %v192
    %v320 = vpop.f32.mrb[0].mxu0
    %v321 = vadd.f32 %v133, %v320
    %v322 = vpop.f32.mrb[0].mxu0
    %v323 = vadd.f32 %v137, %v322
    %324 = vmatprep.mubr.f32.mxu0 0.0
    %325 = vmatmul.mubr.f32.gmra.mrb[0].mxu0 %v195
    %v326 = vpop.f32.mrb[0].mxu0
    %v327 = vadd.f32 %v133, %v326
    %v328 = vpop.f32.mrb[0].mxu0
    %v329 = vadd.f32 %v137, %v328
    %330 = vmatprep.mubr.f32.mxu0 0.0
    %331 = vmatmul.mubr.f32.gmra.mrb[0].mxu0 %v198
    %v332 = vpop.f32.mrb[0].mxu0
    %v333 = vadd.f32 %v133, %v332
    %v334 = vpop.f32.mrb[0].mxu0
    %v335 = vadd.f32 %v137, %v334
    %336 = vmatprep.mubr.f32.mxu0 0.0
    %337 = vmatmul.mubr.f32.gmra.mrb[0].mxu0 %v201
    %v338 = vpop.f32.mrb[0].mxu0
    %v339 = vadd.f32 %v133, %v338
    %v340 = vpop.f32.mrb[0].mxu0
    %v341 = vadd.f32 %v137, %v340
    %342 = vmatprep.mubr.f32.mxu0 0.0
    %343 = vmatmul.mubr.f32.gmra.mrb[0].mxu0 %v204
    %v344 = vpop.f32.mrb[0].mxu0
    %v345 = vadd.f32 %v133, %v344
    %v346 = vpop.f32.mrb[0].mxu0
    %v347 = vadd.f32 %v137, %v346
    %348 = vmatprep.mubr.f32.mxu0 0.0
    %349 = vmatmul.mubr.f32.gmra.mrb[0].mxu0 %v207
    %v350 = vpop.f32.mrb[0].mxu0
    %v351 = vadd.f32 %v133, %v350
    %v352 = vpop.f32.mrb[0].mxu0
    %v353 = vadd.f32 %v137, %v352
    %354 = vmatprep.mubr.f32.mxu0 0.0
    %355 = vmatmul.mubr.f32.gmra.mrb[0].mxu0 %v210
    %v356 = vpop.f32.mrb[0].mxu0
    %v357 = vadd.f32 %v133, %v356
    %v358 = vpop.f32.mrb[0].mxu0
    %v359 = vadd.f32 %v137, %v358
    %360 = vmatprep.mubr.f32.mxu0 0.0
    %361 = vmatmul.mubr.f32.gmra.mrb[0].mxu0 %v213
    %v362 = vpop.f32.mrb[0].mxu0
    %v363 = vadd.f32 %v133, %v362
    %v364 = vpop.f32.mrb[0].mxu0
    %v365 = vadd.f32 %v137, %v364
    %366 = vmatprep.mubr.f32.mxu0 0.0
    %367 = vmatmul.mubr.f32.gmra.mrb[0].mxu0 %v216
    %v368 = vpop.f32.mrb[0].mxu0
    %v369 = vadd.f32 %v133, %v368
    %v370 = vpop.f32.mrb[0].mxu0
    %v371 = vadd.f32 %v137, %v370
    %372 = vmatprep.mubr.f32.mxu0 0.0
    %373 = vmatmul.mubr.f32.gmra.mrb[0].mxu0 %v219
    %v374 = vpop.f32.mrb[0].mxu0
    %v375 = vadd.f32 %v133, %v374
    %v376 = vpop.f32.mrb[0].mxu0
    %v377 = vadd.f32 %v137, %v376
    %378 = vmatprep.mubr.f32.mxu0 0.0
    %379 = vmatmul.mubr.f32.gmra.mrb[0].mxu0 %v222
    %v380 = vpop.f32.mrb[0].mxu0
    %v381 = vadd.f32 %v133, %v380
    %v382 = vpop.f32.mrb[0].mxu0
    %v383 = vadd.f32 %v137, %v382
    %384 = vdwg.mxu0
    %385 = vmatprep.subr.mxu0 %v93
    %386 = vmatpush1.msra.mxu0 %v92
    %387 = vmatprep.subr.mxu0 %v102
    %388 = vmatpush1.msra.mxu0 %v101
    %389 = vmatprep.subr.mxu0 %v111
    %390 = vmatpush1.msra.mxu0 %v110
    %391 = vmatprep.subr.mxu0 %v120
    %392 = vmatpush1.msra.mxu0 %v119
    %393 = vmatprep.subr.mxu0 0.0
    %394 = vmatpush1.msra.mxu0 0.0
    %395 = vmatprep.subr.mxu0 0.0
    %396 = vmatpush1.msra.mxu0 0.0
    %397 = vmatprep.subr.mxu0 0.0
    %398 = vmatpush1.msra.mxu0 0.0
    %399 = vmatprep.subr.mxu0 0.0
    %400 = vmatpush1.msra.mxu0 0.0
    %401 = vmatprep.subr.mxu0 0.0
    %402 = vmatpush1.msra.mxu0 0.0
    %403 = vmatprep.subr.mxu0 0.0
    %404 = vmatpush1.msra.mxu0 0.0
    %405 = vmatprep.subr.mxu0 0.0
    %406 = vmatpush1.msra.mxu0 0.0
    %407 = vmatprep.subr.mxu0 0.0
    %408 = vmatpush1.msra.mxu0 0.0
    %409 = vmatprep.subr.mxu0 0.0
    %410 = vmatpush1.msra.mxu0 0.0
    %411 = vmatprep.subr.mxu0 0.0
    %412 = vmatpush1.msra.mxu0 0.0
    %413 = vmatprep.subr.mxu0 0.0
    %414 = vmatpush1.msra.mxu0 0.0
    %415 = vmatprep.subr.mxu0 0.0
    %416 = vmatpush1.msra.mxu0 0.0
    %417 = vmatprep.subr.mxu0 0.0
    %418 = vmatpush1.msra.mxu0 0.0
    %419 = vmatprep.subr.mxu0 0.0
    %420 = vmatpush1.msra.mxu0 0.0
    %421 = vmatprep.subr.mxu0 0.0
    %422 = vmatpush1.msra.mxu0 0.0
    %423 = vmatprep.subr.mxu0 0.0
    %424 = vmatpush1.msra.mxu0 0.0
    %425 = vmatprep.subr.mxu0 0.0
    %426 = vmatpush1.msra.mxu0 0.0
    %427 = vmatprep.subr.mxu0 0.0
    %428 = vmatpush1.msra.mxu0 0.0
    %429 = vmatprep.subr.mxu0 0.0
    %430 = vmatpush1.msra.mxu0 0.0
    %431 = vmatprep.subr.mxu0 0.0
    %432 = vmatpush1.msra.mxu0 0.0
    %433 = vmatprep.subr.mxu0 0.0
    %434 = vmatpush1.msra.mxu0 0.0
    %435 = vmatprep.subr.mxu0 0.0
    %436 = vmatpush1.msra.mxu0 0.0
    %437 = vmatprep.subr.mxu0 0.0
    %438 = vmatpush1.msra.mxu0 0.0
    %439 = vmatprep.subr.mxu0 0.0
    %440 = vmatpush1.msra.mxu0 0.0
    %441 = vmatprep.subr.mxu0 0.0
    %442 = vmatpush1.msra.mxu0 0.0
    %443 = vmatprep.subr.mxu0 0.0
    %444 = vmatpush1.msra.mxu0 0.0
    %445 = vmatprep.subr.mxu0 0.0
    %446 = vmatpush1.msra.mxu0 0.0
    %447 = vmatprep.subr.mxu0 0.0
    %448 = vmatpush1.msra.mxu0 0.0
    %449 = vmatprep.mubr.f32.mxu0 0.0
    %450 = vmatmul.mubr.f32.gmra.mrb[0].mxu0 %v177
    %v451 = vpop.f32.mrb[0].mxu0
    %v452 = vadd.f32 %v141, %v451
    %v453 = vpop.f32.mrb[0].mxu0
    %v454 = vadd.f32 %v145, %v453
    %455 = vmatprep.mubr.f32.mxu0 0.0
    %456 = vmatmul.mubr.f32.gmra.mrb[0].mxu0 %v180
    %v457 = vpop.f32.mrb[0].mxu0
    %v458 = vadd.f32 %v141, %v457
    %v459 = vpop.f32.mrb[0].mxu0
    %v460 = vadd.f32 %v145, %v459
    %461 = vmatprep.mubr.f32.mxu0 0.0
    %462 = vmatmul.mubr.f32.gmra.mrb[0].mxu0 %v183
    %v463 = vpop.f32.mrb[0].mxu0
    %v464 = vadd.f32 %v141, %v463
    %v465 = vpop.f32.mrb[0].mxu0
    %v466 = vadd.f32 %v145, %v465
    %467 = vmatprep.mubr.f32.mxu0 0.0
    %468 = vmatmul.mubr.f32.gmra.mrb[0].mxu0 %v186
    %v469 = vpop.f32.mrb[0].mxu0
    %v470 = vadd.f32 %v141, %v469
    %v471 = vpop.f32.mrb[0].mxu0
    %v472 = vadd.f32 %v145, %v471
    %473 = vmatprep.mubr.f32.mxu0 0.0
    %474 = vmatmul.mubr.f32.gmra.mrb[0].mxu0 %v189
    %v475 = vpop.f32.mrb[0].mxu0
    %v476 = vadd.f32 %v141, %v475
    %v477 = vpop.f32.mrb[0].mxu0
    %v478 = vadd.f32 %v145, %v477
    %479 = vmatprep.mubr.f32.mxu0 0.0
    %480 = vmatmul.mubr.f32.gmra.mrb[0].mxu0 %v192
    %v481 = vpop.f32.mrb[0].mxu0
    %v482 = vadd.f32 %v141, %v481
    %v483 = vpop.f32.mrb[0].mxu0
    %v484 = vadd.f32 %v145, %v483
    %485 = vmatprep.mubr.f32.mxu0 0.0
    %486 = vmatmul.mubr.f32.gmra.mrb[0].mxu0 %v195
    %v487 = vpop.f32.mrb[0].mxu0
    %v488 = vadd.f32 %v141, %v487
    %v489 = vpop.f32.mrb[0].mxu0
    %v490 = vadd.f32 %v145, %v489
    %491 = vmatprep.mubr.f32.mxu0 0.0
    %492 = vmatmul.mubr.f32.gmra.mrb[0].mxu0 %v198
    %v493 = vpop.f32.mrb[0].mxu0
    %v494 = vadd.f32 %v141, %v493
    %v495 = vpop.f32.mrb[0].mxu0
    %v496 = vadd.f32 %v145, %v495
    %497 = vmatprep.mubr.f32.mxu0 0.0
    %498 = vmatmul.mubr.f32.gmra.mrb[0].mxu0 %v201
    %v499 = vpop.f32.mrb[0].mxu0
    %v500 = vadd.f32 %v141, %v499
    %v501 = vpop.f32.mrb[0].mxu0
    %v502 = vadd.f32 %v145, %v501
    %503 = vmatprep.mubr.f32.mxu0 0.0
    %504 = vmatmul.mubr.f32.gmra.mrb[0].mxu0 %v204
    %v505 = vpop.f32.mrb[0].mxu0
    %v506 = vadd.f32 %v141, %v505
    %v507 = vpop.f32.mrb[0].mxu0
    %v508 = vadd.f32 %v145, %v507
    %509 = vmatprep.mubr.f32.mxu0 0.0
    %510 = vmatmul.mubr.f32.gmra.mrb[0].mxu0 %v207
    %v511 = vpop.f32.mrb[0].mxu0
    %v512 = vadd.f32 %v141, %v511
    %v513 = vpop.f32.mrb[0].mxu0
    %v514 = vadd.f32 %v145, %v513
    %515 = vmatprep.mubr.f32.mxu0 0.0
    %516 = vmatmul.mubr.f32.gmra.mrb[0].mxu0 %v210
    %v517 = vpop.f32.mrb[0].mxu0
    %v518 = vadd.f32 %v141, %v517
    %v519 = vpop.f32.mrb[0].mxu0
    %v520 = vadd.f32 %v145, %v519
    %521 = vmatprep.mubr.f32.mxu0 0.0
    %522 = vmatmul.mubr.f32.gmra.mrb[0].mxu0 %v213
    %v523 = vpop.f32.mrb[0].mxu0
    %v524 = vadd.f32 %v141, %v523
    %v525 = vpop.f32.mrb[0].mxu0
    %v526 = vadd.f32 %v145, %v525
    %527 = vmatprep.mubr.f32.mxu0 0.0
    %528 = vmatmul.mubr.f32.gmra.mrb[0].mxu0 %v216
    %v529 = vpop.f32.mrb[0].mxu0
    %v530 = vadd.f32 %v141, %v529
    %v531 = vpop.f32.mrb[0].mxu0
    %v532 = vadd.f32 %v145, %v531
    %533 = vmatprep.mubr.f32.mxu0 0.0
    %534 = vmatmul.mubr.f32.gmra.mrb[0].mxu0 %v219
    %v535 = vpop.f32.mrb[0].mxu0
    %v536 = vadd.f32 %v141, %v535
    %v537 = vpop.f32.mrb[0].mxu0
    %v538 = vadd.f32 %v145, %v537
    %539 = vmatprep.mubr.f32.mxu0 0.0
    %540 = vmatmul.mubr.f32.gmra.mrb[0].mxu0 %v222
    %v541 = vpop.f32.mrb[0].mxu0
    %v542 = vadd.f32 %v141, %v541
    %v543 = vpop.f32.mrb[0].mxu0
    %v544 = vadd.f32 %v145, %v543
    %545 = vdwg.mxu0
    %546 = vmatprep.subr.mxu0 %v95
    %547 = vmatpush1.msra.mxu0 %v94
    %548 = vmatprep.subr.mxu0 %v104
    %549 = vmatpush1.msra.mxu0 %v103
    %550 = vmatprep.subr.mxu0 %v113
    %551 = vmatpush1.msra.mxu0 %v112
    %552 = vmatprep.subr.mxu0 %v122
    %553 = vmatpush1.msra.mxu0 %v121
    %554 = vmatprep.subr.mxu0 0.0
    %555 = vmatpush1.msra.mxu0 0.0
    %556 = vmatprep.subr.mxu0 0.0
    %557 = vmatpush1.msra.mxu0 0.0
    %558 = vmatprep.subr.mxu0 0.0
    %559 = vmatpush1.msra.mxu0 0.0
    %560 = vmatprep.subr.mxu0 0.0
    %561 = vmatpush1.msra.mxu0 0.0
    %562 = vmatprep.subr.mxu0 0.0
    %563 = vmatpush1.msra.mxu0 0.0
    %564 = vmatprep.subr.mxu0 0.0
    %565 = vmatpush1.msra.mxu0 0.0
    %566 = vmatprep.subr.mxu0 0.0
    %567 = vmatpush1.msra.mxu0 0.0
    %568 = vmatprep.subr.mxu0 0.0
    %569 = vmatpush1.msra.mxu0 0.0
    %570 = vmatprep.subr.mxu0 0.0
    %571 = vmatpush1.msra.mxu0 0.0
    %572 = vmatprep.subr.mxu0 0.0
    %573 = vmatpush1.msra.mxu0 0.0
    %574 = vmatprep.subr.mxu0 0.0
    %575 = vmatpush1.msra.mxu0 0.0
    %576 = vmatprep.subr.mxu0 0.0
    %577 = vmatpush1.msra.mxu0 0.0
    %578 = vmatprep.subr.mxu0 0.0
    %579 = vmatpush1.msra.mxu0 0.0
    %580 = vmatprep.subr.mxu0 0.0
    %581 = vmatpush1.msra.mxu0 0.0
    %582 = vmatprep.subr.mxu0 0.0
    %583 = vmatpush1.msra.mxu0 0.0
    %584 = vmatprep.subr.mxu0 0.0
    %585 = vmatpush1.msra.mxu0 0.0
    %586 = vmatprep.subr.mxu0 0.0
    %587 = vmatpush1.msra.mxu0 0.0
    %588 = vmatprep.subr.mxu0 0.0
    %589 = vmatpush1.msra.mxu0 0.0
    %590 = vmatprep.subr.mxu0 0.0
    %591 = vmatpush1.msra.mxu0 0.0
    %592 = vmatprep.subr.mxu0 0.0
    %593 = vmatpush1.msra.mxu0 0.0
    %594 = vmatprep.subr.mxu0 0.0
    %595 = vmatpush1.msra.mxu0 0.0
    %596 = vmatprep.subr.mxu0 0.0
    %597 = vmatpush1.msra.mxu0 0.0
    %598 = vmatprep.subr.mxu0 0.0
    %599 = vmatpush1.msra.mxu0 0.0
    %600 = vmatprep.subr.mxu0 0.0
    %601 = vmatpush1.msra.mxu0 0.0
    %602 = vmatprep.subr.mxu0 0.0
    %603 = vmatpush1.msra.mxu0 0.0
    %604 = vmatprep.subr.mxu0 0.0
    %605 = vmatpush1.msra.mxu0 0.0
    %606 = vmatprep.subr.mxu0 0.0
    %607 = vmatpush1.msra.mxu0 0.0
    %608 = vmatprep.subr.mxu0 0.0
    %609 = vmatpush1.msra.mxu0 0.0
    %610 = vmatprep.mubr.f32.mxu0 0.0
    %611 = vmatmul.mubr.f32.gmra.mrb[0].mxu0 %v177
    %v612 = vpop.f32.mrb[0].mxu0
    %v613 = vadd.f32 %v149, %v612
    %v614 = vpop.f32.mrb[0].mxu0
    %v615 = vadd.f32 %v153, %v614
    %616 = vmatprep.mubr.f32.mxu0 0.0
    %617 = vmatmul.mubr.f32.gmra.mrb[0].mxu0 %v180
    %v618 = vpop.f32.mrb[0].mxu0
    %v619 = vadd.f32 %v149, %v618
    %v620 = vpop.f32.mrb[0].mxu0
    %v621 = vadd.f32 %v153, %v620
    %622 = vmatprep.mubr.f32.mxu0 0.0
    %623 = vmatmul.mubr.f32.gmra.mrb[0].mxu0 %v183
    %v624 = vpop.f32.mrb[0].mxu0
    %v625 = vadd.f32 %v149, %v624
    %v626 = vpop.f32.mrb[0].mxu0
    %v627 = vadd.f32 %v153, %v626
    %628 = vmatprep.mubr.f32.mxu0 0.0
    %629 = vmatmul.mubr.f32.gmra.mrb[0].mxu0 %v186
    %v630 = vpop.f32.mrb[0].mxu0
    %v631 = vadd.f32 %v149, %v630
    %v632 = vpop.f32.mrb[0].mxu0
    %v633 = vadd.f32 %v153, %v632
    %634 = vmatprep.mubr.f32.mxu0 0.0
    %635 = vmatmul.mubr.f32.gmra.mrb[0].mxu0 %v189
    %v636 = vpop.f32.mrb[0].mxu0
    %v637 = vadd.f32 %v149, %v636
    %v638 = vpop.f32.mrb[0].mxu0
    %v639 = vadd.f32 %v153, %v638
    %640 = vmatprep.mubr.f32.mxu0 0.0
    %641 = vmatmul.mubr.f32.gmra.mrb[0].mxu0 %v192
    %v642 = vpop.f32.mrb[0].mxu0
    %v643 = vadd.f32 %v149, %v642
    %v644 = vpop.f32.mrb[0].mxu0
    %v645 = vadd.f32 %v153, %v644
    %646 = vmatprep.mubr.f32.mxu0 0.0
    %647 = vmatmul.mubr.f32.gmra.mrb[0].mxu0 %v195
    %v648 = vpop.f32.mrb[0].mxu0
    %v649 = vadd.f32 %v149, %v648
    %v650 = vpop.f32.mrb[0].mxu0
    %v651 = vadd.f32 %v153, %v650
    %652 = vmatprep.mubr.f32.mxu0 0.0
    %653 = vmatmul.mubr.f32.gmra.mrb[0].mxu0 %v198
    %v654 = vpop.f32.mrb[0].mxu0
    %v655 = vadd.f32 %v149, %v654
    %v656 = vpop.f32.mrb[0].mxu0
    %v657 = vadd.f32 %v153, %v656
    %658 = vmatprep.mubr.f32.mxu0 0.0
    %659 = vmatmul.mubr.f32.gmra.mrb[0].mxu0 %v201
    %v660 = vpop.f32.mrb[0].mxu0
    %v661 = vadd.f32 %v149, %v660
    %v662 = vpop.f32.mrb[0].mxu0
    %v663 = vadd.f32 %v153, %v662
    %664 = vmatprep.mubr.f32.mxu0 0.0
    %665 = vmatmul.mubr.f32.gmra.mrb[0].mxu0 %v204
    %v666 = vpop.f32.mrb[0].mxu0
    %v667 = vadd.f32 %v149, %v666
    %v668 = vpop.f32.mrb[0].mxu0
    %v669 = vadd.f32 %v153, %v668
    %670 = vmatprep.mubr.f32.mxu0 0.0
    %671 = vmatmul.mubr.f32.gmra.mrb[0].mxu0 %v207
    %v672 = vpop.f32.mrb[0].mxu0
    %v673 = vadd.f32 %v149, %v672
    %v674 = vpop.f32.mrb[0].mxu0
    %v675 = vadd.f32 %v153, %v674
    %676 = vmatprep.mubr.f32.mxu0 0.0
    %677 = vmatmul.mubr.f32.gmra.mrb[0].mxu0 %v210
    %v678 = vpop.f32.mrb[0].mxu0
    %v679 = vadd.f32 %v149, %v678
    %v680 = vpop.f32.mrb[0].mxu0
    %v681 = vadd.f32 %v153, %v680
    %682 = vmatprep.mubr.f32.mxu0 0.0
    %683 = vmatmul.mubr.f32.gmra.mrb[0].mxu0 %v213
    %v684 = vpop.f32.mrb[0].mxu0
    %v685 = vadd.f32 %v149, %v684
    %v686 = vpop.f32.mrb[0].mxu0
    %v687 = vadd.f32 %v153, %v686
    %688 = vmatprep.mubr.f32.mxu0 0.0
    %689 = vmatmul.mubr.f32.gmra.mrb[0].mxu0 %v216
    %v690 = vpop.f32.mrb[0].mxu0
    %v691 = vadd.f32 %v149, %v690
    %v692 = vpop.f32.mrb[0].mxu0
    %v693 = vadd.f32 %v153, %v692
    %694 = vmatprep.mubr.f32.mxu0 0.0
    %695 = vmatmul.mubr.f32.gmra.mrb[0].mxu0 %v219
    %v696 = vpop.f32.mrb[0].mxu0
    %v697 = vadd.f32 %v149, %v696
    %v698 = vpop.f32.mrb[0].mxu0
    %v699 = vadd.f32 %v153, %v698
    %700 = vmatprep.mubr.f32.mxu0 0.0
    %701 = vmatmul.mubr.f32.gmra.mrb[0].mxu0 %v222
    %v702 = vpop.f32.mrb[0].mxu0
    %v703 = vadd.f32 %v149, %v702
    %v704 = vpop.f32.mrb[0].mxu0
    %v705 = vadd.f32 %v153, %v704
    %706 = vdwg.mxu0
    %707 = vmatprep.subr.mxu0 %v97
    %708 = vmatpush1.msra.mxu0 %v96
    %709 = vmatprep.subr.mxu0 %v106
    %710 = vmatpush1.msra.mxu0 %v105
    %711 = vmatprep.subr.mxu0 %v115
    %712 = vmatpush1.msra.mxu0 %v114
    %713 = vmatprep.subr.mxu0 %v124
    %714 = vmatpush1.msra.mxu0 %v123
    %715 = vmatprep.subr.mxu0 0.0
    %716 = vmatpush1.msra.mxu0 0.0
    %717 = vmatprep.subr.mxu0 0.0
    %718 = vmatpush1.msra.mxu0 0.0
    %719 = vmatprep.subr.mxu0 0.0
    %720 = vmatpush1.msra.mxu0 0.0
    %721 = vmatprep.subr.mxu0 0.0
    %722 = vmatpush1.msra.mxu0 0.0
    %723 = vmatprep.subr.mxu0 0.0
    %724 = vmatpush1.msra.mxu0 0.0
    %725 = vmatprep.subr.mxu0 0.0
    %726 = vmatpush1.msra.mxu0 0.0
    %727 = vmatprep.subr.mxu0 0.0
    %728 = vmatpush1.msra.mxu0 0.0
    %729 = vmatprep.subr.mxu0 0.0
    %730 = vmatpush1.msra.mxu0 0.0
    %731 = vmatprep.subr.mxu0 0.0
    %732 = vmatpush1.msra.mxu0 0.0
    %733 = vmatprep.subr.mxu0 0.0
    %734 = vmatpush1.msra.mxu0 0.0
    %735 = vmatprep.subr.mxu0 0.0
    %736 = vmatpush1.msra.mxu0 0.0
    %737 = vmatprep.subr.mxu0 0.0
    %738 = vmatpush1.msra.mxu0 0.0
    %739 = vmatprep.subr.mxu0 0.0
    %740 = vmatpush1.msra.mxu0 0.0
    %741 = vmatprep.subr.mxu0 0.0
    %742 = vmatpush1.msra.mxu0 0.0
    %743 = vmatprep.subr.mxu0 0.0
    %744 = vmatpush1.msra.mxu0 0.0
    %745 = vmatprep.subr.mxu0 0.0
    %746 = vmatpush1.msra.mxu0 0.0
    %747 = vmatprep.subr.mxu0 0.0
    %748 = vmatpush1.msra.mxu0 0.0
    %749 = vmatprep.subr.mxu0 0.0
    %750 = vmatpush1.msra.mxu0 0.0
    %751 = vmatprep.subr.mxu0 0.0
    %752 = vmatpush1.msra.mxu0 0.0
    %753 = vmatprep.subr.mxu0 0.0
    %754 = vmatpush1.msra.mxu0 0.0
    %755 = vmatprep.subr.mxu0 0.0
    %756 = vmatpush1.msra.mxu0 0.0
    %757 = vmatprep.subr.mxu0 0.0
    %758 = vmatpush1.msra.mxu0 0.0
    %759 = vmatprep.subr.mxu0 0.0
    %760 = vmatpush1.msra.mxu0 0.0
    %761 = vmatprep.subr.mxu0 0.0
    %762 = vmatpush1.msra.mxu0 0.0
    %763 = vmatprep.subr.mxu0 0.0
    %764 = vmatpush1.msra.mxu0 0.0
    %765 = vmatprep.subr.mxu0 0.0
    %766 = vmatpush1.msra.mxu0 0.0
    %767 = vmatprep.subr.mxu0 0.0
    %768 = vmatpush1.msra.mxu0 0.0
    %769 = vmatprep.subr.mxu0 0.0
    %770 = vmatpush1.msra.mxu0 0.0
    %771 = vmatprep.mubr.f32.mxu0 0.0
    %772 = vmatmul.mubr.f32.gmra.mrb[0].mxu0 %v177
    %v773 = vpop.f32.mrb[0].mxu0
    %v774 = vadd.f32 %v157, %v773
    %v775 = vpop.f32.mrb[0].mxu0
    %v776 = vadd.f32 %v161, %v775
    %777 = vmatprep.mubr.f32.mxu0 0.0
    %778 = vmatmul.mubr.f32.gmra.mrb[0].mxu0 %v180
    %v779 = vpop.f32.mrb[0].mxu0
    %v780 = vadd.f32 %v157, %v779
    %v781 = vpop.f32.mrb[0].mxu0
    %v782 = vadd.f32 %v161, %v781
    %783 = vmatprep.mubr.f32.mxu0 0.0
    %784 = vmatmul.mubr.f32.gmra.mrb[0].mxu0 %v183
    %v785 = vpop.f32.mrb[0].mxu0
    %v786 = vadd.f32 %v157, %v785
    %v787 = vpop.f32.mrb[0].mxu0
    %v788 = vadd.f32 %v161, %v787
    %789 = vmatprep.mubr.f32.mxu0 0.0
    %790 = vmatmul.mubr.f32.gmra.mrb[0].mxu0 %v186
    %v791 = vpop.f32.mrb[0].mxu0
    %v792 = vadd.f32 %v157, %v791
    %v793 = vpop.f32.mrb[0].mxu0
    %v794 = vadd.f32 %v161, %v793
    %795 = vmatprep.mubr.f32.mxu0 0.0
    %796 = vmatmul.mubr.f32.gmra.mrb[0].mxu0 %v189
    %v797 = vpop.f32.mrb[0].mxu0
    %v798 = vadd.f32 %v157, %v797
    %v799 = vpop.f32.mrb[0].mxu0
    %v800 = vadd.f32 %v161, %v799
    %801 = vmatprep.mubr.f32.mxu0 0.0
    %802 = vmatmul.mubr.f32.gmra.mrb[0].mxu0 %v192
    %v803 = vpop.f32.mrb[0].mxu0
    %v804 = vadd.f32 %v157, %v803
    %v805 = vpop.f32.mrb[0].mxu0
    %v806 = vadd.f32 %v161, %v805
    %807 = vmatprep.mubr.f32.mxu0 0.0
    %808 = vmatmul.mubr.f32.gmra.mrb[0].mxu0 %v195
    %v809 = vpop.f32.mrb[0].mxu0
    %v810 = vadd.f32 %v157, %v809
    %v811 = vpop.f32.mrb[0].mxu0
    %v812 = vadd.f32 %v161, %v811
    %813 = vmatprep.mubr.f32.mxu0 0.0
    %814 = vmatmul.mubr.f32.gmra.mrb[0].mxu0 %v198
    %v815 = vpop.f32.mrb[0].mxu0
    %v816 = vadd.f32 %v157, %v815
    %v817 = vpop.f32.mrb[0].mxu0
    %v818 = vadd.f32 %v161, %v817
    %819 = vmatprep.mubr.f32.mxu0 0.0
    %820 = vmatmul.mubr.f32.gmra.mrb[0].mxu0 %v201
    %v821 = vpop.f32.mrb[0].mxu0
    %v822 = vadd.f32 %v157, %v821
    %v823 = vpop.f32.mrb[0].mxu0
    %v824 = vadd.f32 %v161, %v823
    %825 = vmatprep.mubr.f32.mxu0 0.0
    %826 = vmatmul.mubr.f32.gmra.mrb[0].mxu0 %v204
    %v827 = vpop.f32.mrb[0].mxu0
    %v828 = vadd.f32 %v157, %v827
    %v829 = vpop.f32.mrb[0].mxu0
    %v830 = vadd.f32 %v161, %v829
    %831 = vmatprep.mubr.f32.mxu0 0.0
    %832 = vmatmul.mubr.f32.gmra.mrb[0].mxu0 %v207
    %v833 = vpop.f32.mrb[0].mxu0
    %v834 = vadd.f32 %v157, %v833
    %v835 = vpop.f32.mrb[0].mxu0
    %v836 = vadd.f32 %v161, %v835
    %837 = vmatprep.mubr.f32.mxu0 0.0
    %838 = vmatmul.mubr.f32.gmra.mrb[0].mxu0 %v210
    %v839 = vpop.f32.mrb[0].mxu0
    %v840 = vadd.f32 %v157, %v839
    %v841 = vpop.f32.mrb[0].mxu0
    %v842 = vadd.f32 %v161, %v841
    %843 = vmatprep.mubr.f32.mxu0 0.0
    %844 = vmatmul.mubr.f32.gmra.mrb[0].mxu0 %v213
    %v845 = vpop.f32.mrb[0].mxu0
    %v846 = vadd.f32 %v157, %v845
    %v847 = vpop.f32.mrb[0].mxu0
    %v848 = vadd.f32 %v161, %v847
    %849 = vmatprep.mubr.f32.mxu0 0.0
    %850 = vmatmul.mubr.f32.gmra.mrb[0].mxu0 %v216
    %v851 = vpop.f32.mrb[0].mxu0
    %v852 = vadd.f32 %v157, %v851
    %v853 = vpop.f32.mrb[0].mxu0
    %v854 = vadd.f32 %v161, %v853
    %855 = vmatprep.mubr.f32.mxu0 0.0
    %856 = vmatmul.mubr.f32.gmra.mrb[0].mxu0 %v219
    %v857 = vpop.f32.mrb[0].mxu0
    %v858 = vadd.f32 %v157, %v857
    %v859 = vpop.f32.mrb[0].mxu0
    %v860 = vadd.f32 %v161, %v859
    %861 = vmatprep.mubr.f32.mxu0 0.0
    %862 = vmatmul.mubr.f32.gmra.mrb[0].mxu0 %v222
    %v863 = vpop.f32.mrb[0].mxu0
    %v864 = vadd.f32 %v157, %v863
    %v865 = vpop.f32.mrb[0].mxu0
    %v866 = vadd.f32 %v161, %v865
    %867 = vdwg.mxu0
    %868 = vmatprep.subr.mxu0 0.0
    %869 = vmatpush1.msra.mxu0 %v98
    %870 = vmatprep.subr.mxu0 0.0
    %871 = vmatpush1.msra.mxu0 %v107
    %872 = vmatprep.subr.mxu0 0.0
    %873 = vmatpush1.msra.mxu0 %v116
    %874 = vmatprep.subr.mxu0 0.0
    %875 = vmatpush1.msra.mxu0 %v125
    %876 = vmatprep.subr.mxu0 0.0
    %877 = vmatpush1.msra.mxu0 0.0
    %878 = vmatprep.subr.mxu0 0.0
    %879 = vmatpush1.msra.mxu0 0.0
    %880 = vmatprep.subr.mxu0 0.0
    %881 = vmatpush1.msra.mxu0 0.0
    %882 = vmatprep.subr.mxu0 0.0
    %883 = vmatpush1.msra.mxu0 0.0
    %884 = vmatprep.subr.mxu0 0.0
    %885 = vmatpush1.msra.mxu0 0.0
    %886 = vmatprep.subr.mxu0 0.0
    %887 = vmatpush1.msra.mxu0 0.0
    %888 = vmatprep.subr.mxu0 0.0
    %889 = vmatpush1.msra.mxu0 0.0
    %890 = vmatprep.subr.mxu0 0.0
    %891 = vmatpush1.msra.mxu0 0.0
    %892 = vmatprep.subr.mxu0 0.0
    %893 = vmatpush1.msra.mxu0 0.0
    %894 = vmatprep.subr.mxu0 0.0
    %895 = vmatpush1.msra.mxu0 0.0
    %896 = vmatprep.subr.mxu0 0.0
    %897 = vmatpush1.msra.mxu0 0.0
    %898 = vmatprep.subr.mxu0 0.0
    %899 = vmatpush1.msra.mxu0 0.0
    %900 = vmatprep.subr.mxu0 0.0
    %901 = vmatpush1.msra.mxu0 0.0
    %902 = vmatprep.subr.mxu0 0.0
    %903 = vmatpush1.msra.mxu0 0.0
    %904 = vmatprep.subr.mxu0 0.0
    %905 = vmatpush1.msra.mxu0 0.0
    %906 = vmatprep.subr.mxu0 0.0
    %907 = vmatpush1.msra.mxu0 0.0
    %908 = vmatprep.subr.mxu0 0.0
    %909 = vmatpush1.msra.mxu0 0.0
    %910 = vmatprep.subr.mxu0 0.0
    %911 = vmatpush1.msra.mxu0 0.0
    %912 = vmatprep.subr.mxu0 0.0
    %913 = vmatpush1.msra.mxu0 0.0
    %914 = vmatprep.subr.mxu0 0.0
    %915 = vmatpush1.msra.mxu0 0.0
    %916 = vmatprep.subr.mxu0 0.0
    %917 = vmatpush1.msra.mxu0 0.0
    %918 = vmatprep.subr.mxu0 0.0
    %919 = vmatpush1.msra.mxu0 0.0
    %920 = vmatprep.subr.mxu0 0.0
    %921 = vmatpush1.msra.mxu0 0.0
    %922 = vmatprep.subr.mxu0 0.0
    %923 = vmatpush1.msra.mxu0 0.0
    %924 = vmatprep.subr.mxu0 0.0
    %925 = vmatpush1.msra.mxu0 0.0
    %926 = vmatprep.subr.mxu0 0.0
    %927 = vmatpush1.msra.mxu0 0.0
    %928 = vmatprep.subr.mxu0 0.0
    %929 = vmatpush1.msra.mxu0 0.0
    %930 = vmatprep.subr.mxu0 0.0
    %931 = vmatpush1.msra.mxu0 0.0
    %932 = vmatprep.mubr.f32.mxu0 0.0
    %933 = vmatmul.mubr.f32.gmra.mrb[0].mxu0 %v177
    %v934 = vpop.f32.mrb[0].mxu0
    %v935 = vadd.f32 %v165, %v934
    %v936 = vpop.f32.mrb[0].mxu0
    %937 = vmatprep.mubr.f32.mxu0 0.0
    %938 = vmatmul.mubr.f32.gmra.mrb[0].mxu0 %v180
    %v939 = vpop.f32.mrb[0].mxu0
    %v940 = vadd.f32 %v165, %v939
    %v941 = vpop.f32.mrb[0].mxu0
    %942 = vmatprep.mubr.f32.mxu0 0.0
    %943 = vmatmul.mubr.f32.gmra.mrb[0].mxu0 %v183
    %v944 = vpop.f32.mrb[0].mxu0
    %v945 = vadd.f32 %v165, %v944
    %v946 = vpop.f32.mrb[0].mxu0
    %947 = vmatprep.mubr.f32.mxu0 0.0
    %948 = vmatmul.mubr.f32.gmra.mrb[0].mxu0 %v186
    %v949 = vpop.f32.mrb[0].mxu0
    %v950 = vadd.f32 %v165, %v949
    %v951 = vpop.f32.mrb[0].mxu0
    %952 = vmatprep.mubr.f32.mxu0 0.0
    %953 = vmatmul.mubr.f32.gmra.mrb[0].mxu0 %v189
    %v954 = vpop.f32.mrb[0].mxu0
    %v955 = vadd.f32 %v165, %v954
    %v956 = vpop.f32.mrb[0].mxu0
    %957 = vmatprep.mubr.f32.mxu0 0.0
    %958 = vmatmul.mubr.f32.gmra.mrb[0].mxu0 %v192
    %v959 = vpop.f32.mrb[0].mxu0
    %v960 = vadd.f32 %v165, %v959
    %v961 = vpop.f32.mrb[0].mxu0
    %962 = vmatprep.mubr.f32.mxu0 0.0
    %963 = vmatmul.mubr.f32.gmra.mrb[0].mxu0 %v195
    %v964 = vpop.f32.mrb[0].mxu0
    %v965 = vadd.f32 %v165, %v964
    %v966 = vpop.f32.mrb[0].mxu0
    %967 = vmatprep.mubr.f32.mxu0 0.0
    %968 = vmatmul.mubr.f32.gmra.mrb[0].mxu0 %v198
    %v969 = vpop.f32.mrb[0].mxu0
    %v970 = vadd.f32 %v165, %v969
    %v971 = vpop.f32.mrb[0].mxu0
    %972 = vmatprep.mubr.f32.mxu0 0.0
    %973 = vmatmul.mubr.f32.gmra.mrb[0].mxu0 %v201
    %v974 = vpop.f32.mrb[0].mxu0
    %v975 = vadd.f32 %v165, %v974
    %v976 = vpop.f32.mrb[0].mxu0
    %977 = vmatprep.mubr.f32.mxu0 0.0
    %978 = vmatmul.mubr.f32.gmra.mrb[0].mxu0 %v204
    %v979 = vpop.f32.mrb[0].mxu0
    %v980 = vadd.f32 %v165, %v979
    %v981 = vpop.f32.mrb[0].mxu0
    %982 = vmatprep.mubr.f32.mxu0 0.0
    %983 = vmatmul.mubr.f32.gmra.mrb[0].mxu0 %v207
    %v984 = vpop.f32.mrb[0].mxu0
    %v985 = vadd.f32 %v165, %v984
    %v986 = vpop.f32.mrb[0].mxu0
    %987 = vmatprep.mubr.f32.mxu0 0.0
    %988 = vmatmul.mubr.f32.gmra.mrb[0].mxu0 %v210
    %v989 = vpop.f32.mrb[0].mxu0
    %v990 = vadd.f32 %v165, %v989
    %v991 = vpop.f32.mrb[0].mxu0
    %992 = vmatprep.mubr.f32.mxu0 0.0
    %993 = vmatmul.mubr.f32.gmra.mrb[0].mxu0 %v213
    %v994 = vpop.f32.mrb[0].mxu0
    %v995 = vadd.f32 %v165, %v994
    %v996 = vpop.f32.mrb[0].mxu0
    %997 = vmatprep.mubr.f32.mxu0 0.0
    %998 = vmatmul.mubr.f32.gmra.mrb[0].mxu0 %v216
    %v999 = vpop.f32.mrb[0].mxu0
    %v1000 = vadd.f32 %v165, %v999
    %v1001 = vpop.f32.mrb[0].mxu0
    %1002 = vmatprep.mubr.f32.mxu0 0.0
    %1003 = vmatmul.mubr.f32.gmra.mrb[0].mxu0 %v219
    %v1004 = vpop.f32.mrb[0].mxu0
    %v1005 = vadd.f32 %v165, %v1004
    %v1006 = vpop.f32.mrb[0].mxu0
    %1007 = vmatprep.mubr.f32.mxu0 0.0
    %1008 = vmatmul.mubr.f32.gmra.mrb[0].mxu0 %v222
    %v1009 = vpop.f32.mrb[0].mxu0
    %v1010 = vadd.f32 %v165, %v1009
    %v1011 = vpop.f32.mrb[0].mxu0
    %1012 = vdwg.mxu0
    %vm1029 = vcmask 1046528
    %v1030 = vrot.slane %v293, 1
    %v1031 = vrot.slane %v299, 1
    %v1032 = vsel %vm1029, %v1030, %v1031
    %v1033 = vrot.slane %v305, 1
    %v1034 = vrot.slane %v311, 1
    %v1035 = vsel %vm1029, %v1033, %v1034
    %v1036 = vrot.slane %v317, 1
    %v1037 = vrot.slane %v323, 1
    %v1038 = vsel %vm1029, %v1036, %v1037
    %v1039 = vrot.slane %v329, 1
    %v1040 = vrot.slane %v335, 1
    %v1041 = vsel %vm1029, %v1039, %v1040
    %v1042 = vrot.slane %v341, 1
    %v1043 = vrot.slane %v347, 1
    %v1044 = vsel %vm1029, %v1042, %v1043
    %v1045 = vrot.slane %v353, 1
    %v1046 = vrot.slane %v359, 1
    %v1047 = vsel %vm1029, %v1045, %v1046
    %v1048 = vrot.slane %v365, 1
    %v1049 = vrot.slane %v371, 1
    %v1050 = vsel %vm1029, %v1048, %v1049
    %v1051 = vrot.slane %v377, 1
    %v1052 = vrot.slane %v383, 1
    %v1053 = vsel %vm1029, %v1051, %v1052
    %v1070 = vadd.f32 %v291, %v1032
    %v1071 = vadd.f32 %v297, %v1031
    %v1072 = vadd.f32 %v303, %v1035
    %v1073 = vadd.f32 %v309, %v1034
    %v1074 = vadd.f32 %v315, %v1038
    %v1075 = vadd.f32 %v321, %v1037
    %v1076 = vadd.f32 %v327, %v1041
    %v1077 = vadd.f32 %v333, %v1040
    %v1078 = vadd.f32 %v339, %v1044
    %v1079 = vadd.f32 %v345, %v1043
    %v1080 = vadd.f32 %v351, %v1047
    %v1081 = vadd.f32 %v357, %v1046
    %v1082 = vadd.f32 %v363, %v1050
    %v1083 = vadd.f32 %v369, %v1049
    %v1084 = vadd.f32 %v375, %v1053
    %v1085 = vadd.f32 %v381, %v1052
    %v1086 = vmax.f32 %v1070, 0.0
    %v1087 = vmax.f32 %v1071, 0.0
    %v1088 = vmax.f32 %v1072, 0.0
    %v1089 = vmax.f32 %v1073, 0.0
    %v1090 = vmax.f32 %v1074, 0.0
    %v1091 = vmax.f32 %v1075, 0.0
    %v1092 = vmax.f32 %v1076, 0.0
    %v1093 = vmax.f32 %v1077, 0.0
    %v1094 = vmax.f32 %v1078, 0.0
    %v1095 = vmax.f32 %v1079, 0.0
    %v1096 = vmax.f32 %v1080, 0.0
    %v1097 = vmax.f32 %v1081, 0.0
    %v1098 = vmax.f32 %v1082, 0.0
    %v1099 = vmax.f32 %v1083, 0.0
    %v1100 = vmax.f32 %v1084, 0.0
    %v1101 = vmax.f32 %v1085, 0.0
    %v1102 = vsel %vm1029, %v1087, -inf
    %v1103 = vmax.f32 %v1086, %v1102
    %v1104 = vrot.slane %v1103, 4
    %v1105 = vmax.f32 %v1103, %v1104
    %v1106 = vrot.slane %v1105, 2
    %v1107 = vmax.f32 %v1105, %v1106
    %v1108 = vrot.slane %v1107, 1
    %v1109 = vmax.f32 %v1107, %v1108
    %v1110 = vsel %vm1029, %v1089, -inf
    %v1111 = vmax.f32 %v1088, %v1110
    %v1112 = vrot.slane %v1111, 4
    %v1113 = vmax.f32 %v1111, %v1112
    %v1114 = vrot.slane %v1113, 2
    %v1115 = vmax.f32 %v1113, %v1114
    %v1116 = vrot.slane %v1115, 1
    %v1117 = vmax.f32 %v1115, %v1116
    %v1118 = vsel %vm1029, %v1091, -inf
    %v1119 = vmax.f32 %v1090, %v1118
    %v1120 = vrot.slane %v1119, 4
    %v1121 = vmax.f32 %v1119, %v1120
    %v1122 = vrot.slane %v1121, 2
    %v1123 = vmax.f32 %v1121, %v1122
    %v1124 = vrot.slane %v1123, 1
    %v1125 = vmax.f32 %v1123, %v1124
    %v1126 = vsel %vm1029, %v1093, -inf
    %v1127 = vmax.f32 %v1092, %v1126
    %v1128 = vrot.slane %v1127, 4
    %v1129 = vmax.f32 %v1127, %v1128
    %v1130 = vrot.slane %v1129, 2
    %v1131 = vmax.f32 %v1129, %v1130
    %v1132 = vrot.slane %v1131, 1
    %v1133 = vmax.f32 %v1131, %v1132
    %v1134 = vsel %vm1029, %v1095, -inf
    %v1135 = vmax.f32 %v1094, %v1134
    %v1136 = vrot.slane %v1135, 4
    %v1137 = vmax.f32 %v1135, %v1136
    %v1138 = vrot.slane %v1137, 2
    %v1139 = vmax.f32 %v1137, %v1138
    %v1140 = vrot.slane %v1139, 1
    %v1141 = vmax.f32 %v1139, %v1140
    %v1142 = vsel %vm1029, %v1097, -inf
    %v1143 = vmax.f32 %v1096, %v1142
    %v1144 = vrot.slane %v1143, 4
    %v1145 = vmax.f32 %v1143, %v1144
    %v1146 = vrot.slane %v1145, 2
    %v1147 = vmax.f32 %v1145, %v1146
    %v1148 = vrot.slane %v1147, 1
    %v1149 = vmax.f32 %v1147, %v1148
    %v1150 = vsel %vm1029, %v1099, -inf
    %v1151 = vmax.f32 %v1098, %v1150
    %v1152 = vrot.slane %v1151, 4
    %v1153 = vmax.f32 %v1151, %v1152
    %v1154 = vrot.slane %v1153, 2
    %v1155 = vmax.f32 %v1153, %v1154
    %v1156 = vrot.slane %v1155, 1
    %v1157 = vmax.f32 %v1155, %v1156
    %v1158 = vsel %vm1029, %v1101, -inf
    %v1159 = vmax.f32 %v1100, %v1158
    %v1160 = vrot.slane %v1159, 4
    %v1161 = vmax.f32 %v1159, %v1160
    %v1162 = vrot.slane %v1161, 2
    %v1163 = vmax.f32 %v1161, %v1162
    %v1164 = vrot.slane %v1163, 1
    %v1165 = vmax.f32 %v1163, %v1164
    %v1182 = vrot.slane %v454, 1
    %v1183 = vrot.slane %v460, 1
    %v1184 = vsel %vm1029, %v1182, %v1183
    %v1185 = vrot.slane %v466, 1
    %v1186 = vrot.slane %v472, 1
    %v1187 = vsel %vm1029, %v1185, %v1186
    %v1188 = vrot.slane %v478, 1
    %v1189 = vrot.slane %v484, 1
    %v1190 = vsel %vm1029, %v1188, %v1189
    %v1191 = vrot.slane %v490, 1
    %v1192 = vrot.slane %v496, 1
    %v1193 = vsel %vm1029, %v1191, %v1192
    %v1194 = vrot.slane %v502, 1
    %v1195 = vrot.slane %v508, 1
    %v1196 = vsel %vm1029, %v1194, %v1195
    %v1197 = vrot.slane %v514, 1
    %v1198 = vrot.slane %v520, 1
    %v1199 = vsel %vm1029, %v1197, %v1198
    %v1200 = vrot.slane %v526, 1
    %v1201 = vrot.slane %v532, 1
    %v1202 = vsel %vm1029, %v1200, %v1201
    %v1203 = vrot.slane %v538, 1
    %v1204 = vrot.slane %v544, 1
    %v1205 = vsel %vm1029, %v1203, %v1204
    %v1222 = vadd.f32 %v452, %v1184
    %v1223 = vadd.f32 %v458, %v1183
    %v1224 = vadd.f32 %v464, %v1187
    %v1225 = vadd.f32 %v470, %v1186
    %v1226 = vadd.f32 %v476, %v1190
    %v1227 = vadd.f32 %v482, %v1189
    %v1228 = vadd.f32 %v488, %v1193
    %v1229 = vadd.f32 %v494, %v1192
    %v1230 = vadd.f32 %v500, %v1196
    %v1231 = vadd.f32 %v506, %v1195
    %v1232 = vadd.f32 %v512, %v1199
    %v1233 = vadd.f32 %v518, %v1198
    %v1234 = vadd.f32 %v524, %v1202
    %v1235 = vadd.f32 %v530, %v1201
    %v1236 = vadd.f32 %v536, %v1205
    %v1237 = vadd.f32 %v542, %v1204
    %vm1254 = vcmask 1045504
    %v1255 = vrot.slane %v613, 2
    %v1256 = vrot.slane %v619, 2
    %v1257 = vsel %vm1254, %v1255, %v1256
    %v1258 = vrot.slane %v625, 2
    %v1259 = vrot.slane %v631, 2
    %v1260 = vsel %vm1254, %v1258, %v1259
    %v1261 = vrot.slane %v637, 2
    %v1262 = vrot.slane %v643, 2
    %v1263 = vsel %vm1254, %v1261, %v1262
    %v1264 = vrot.slane %v649, 2
    %v1265 = vrot.slane %v655, 2
    %v1266 = vsel %vm1254, %v1264, %v1265
    %v1267 = vrot.slane %v661, 2
    %v1268 = vrot.slane %v667, 2
    %v1269 = vsel %vm1254, %v1267, %v1268
    %v1270 = vrot.slane %v673, 2
    %v1271 = vrot.slane %v679, 2
    %v1272 = vsel %vm1254, %v1270, %v1271
    %v1273 = vrot.slane %v685, 2
    %v1274 = vrot.slane %v691, 2
    %v1275 = vsel %vm1254, %v1273, %v1274
    %v1276 = vrot.slane %v697, 2
    %v1277 = vrot.slane %v703, 2
    %v1278 = vsel %vm1254, %v1276, %v1277
    %v1295 = vadd.f32 %v1222, %v1257
    %v1296 = vadd.f32 %v1223, %v1256
    %v1297 = vadd.f32 %v1224, %v1260
    %v1298 = vadd.f32 %v1225, %v1259
    %v1299 = vadd.f32 %v1226, %v1263
    %v1300 = vadd.f32 %v1227, %v1262
    %v1301 = vadd.f32 %v1228, %v1266
    %v1302 = vadd.f32 %v1229, %v1265
    %v1303 = vadd.f32 %v1230, %v1269
    %v1304 = vadd.f32 %v1231, %v1268
    %v1305 = vadd.f32 %v1232, %v1272
    %v1306 = vadd.f32 %v1233, %v1271
    %v1307 = vadd.f32 %v1234, %v1275
    %v1308 = vadd.f32 %v1235, %v1274
    %v1309 = vadd.f32 %v1236, %v1278
    %v1310 = vadd.f32 %v1237, %v1277
    %v1311 = vmax.f32 %v1295, 0.0
    %v1312 = vmax.f32 %v1296, 0.0
    %v1313 = vmax.f32 %v1297, 0.0
    %v1314 = vmax.f32 %v1298, 0.0
    %v1315 = vmax.f32 %v1299, 0.0
    %v1316 = vmax.f32 %v1300, 0.0
    %v1317 = vmax.f32 %v1301, 0.0
    %v1318 = vmax.f32 %v1302, 0.0
    %v1319 = vmax.f32 %v1303, 0.0
    %v1320 = vmax.f32 %v1304, 0.0
    %v1321 = vmax.f32 %v1305, 0.0
    %v1322 = vmax.f32 %v1306, 0.0
    %v1323 = vmax.f32 %v1307, 0.0
    %v1324 = vmax.f32 %v1308, 0.0
    %v1325 = vmax.f32 %v1309, 0.0
    %v1326 = vmax.f32 %v1310, 0.0
    %v1327 = vsel %vm1254, %v1312, -inf
    %v1328 = vmax.f32 %v1311, %v1327
    %v1329 = vrot.slane %v1328, 4
    %v1330 = vmax.f32 %v1328, %v1329
    %v1331 = vrot.slane %v1330, 2
    %v1332 = vmax.f32 %v1330, %v1331
    %v1333 = vrot.slane %v1332, 1
    %v1334 = vmax.f32 %v1332, %v1333
    %v1335 = vsel %vm1254, %v1314, -inf
    %v1336 = vmax.f32 %v1313, %v1335
    %v1337 = vrot.slane %v1336, 4
    %v1338 = vmax.f32 %v1336, %v1337
    %v1339 = vrot.slane %v1338, 2
    %v1340 = vmax.f32 %v1338, %v1339
    %v1341 = vrot.slane %v1340, 1
    %v1342 = vmax.f32 %v1340, %v1341
    %v1343 = vsel %vm1254, %v1316, -inf
    %v1344 = vmax.f32 %v1315, %v1343
    %v1345 = vrot.slane %v1344, 4
    %v1346 = vmax.f32 %v1344, %v1345
    %v1347 = vrot.slane %v1346, 2
    %v1348 = vmax.f32 %v1346, %v1347
    %v1349 = vrot.slane %v1348, 1
    %v1350 = vmax.f32 %v1348, %v1349
    %v1351 = vsel %vm1254, %v1318, -inf
    %v1352 = vmax.f32 %v1317, %v1351
    %v1353 = vrot.slane %v1352, 4
    %v1354 = vmax.f32 %v1352, %v1353
    %v1355 = vrot.slane %v1354, 2
    %v1356 = vmax.f32 %v1354, %v1355
    %v1357 = vrot.slane %v1356, 1
    %v1358 = vmax.f32 %v1356, %v1357
    %v1359 = vsel %vm1254, %v1320, -inf
    %v1360 = vmax.f32 %v1319, %v1359
    %v1361 = vrot.slane %v1360, 4
    %v1362 = vmax.f32 %v1360, %v1361
    %v1363 = vrot.slane %v1362, 2
    %v1364 = vmax.f32 %v1362, %v1363
    %v1365 = vrot.slane %v1364, 1
    %v1366 = vmax.f32 %v1364, %v1365
    %v1367 = vsel %vm1254, %v1322, -inf
    %v1368 = vmax.f32 %v1321, %v1367
    %v1369 = vrot.slane %v1368, 4
    %v1370 = vmax.f32 %v1368, %v1369
    %v1371 = vrot.slane %v1370, 2
    %v1372 = vmax.f32 %v1370, %v1371
    %v1373 = vrot.slane %v1372, 1
    %v1374 = vmax.f32 %v1372, %v1373
    %v1375 = vsel %vm1254, %v1324, -inf
    %v1376 = vmax.f32 %v1323, %v1375
    %v1377 = vrot.slane %v1376, 4
    %v1378 = vmax.f32 %v1376, %v1377
    %v1379 = vrot.slane %v1378, 2
    %v1380 = vmax.f32 %v1378, %v1379
    %v1381 = vrot.slane %v1380, 1
    %v1382 = vmax.f32 %v1380, %v1381
    %v1383 = vsel %vm1254, %v1326, -inf
    %v1384 = vmax.f32 %v1325, %v1383
    %v1385 = vrot.slane %v1384, 4
    %v1386 = vmax.f32 %v1384, %v1385
    %v1387 = vrot.slane %v1386, 2
    %v1388 = vmax.f32 %v1386, %v1387
    %v1389 = vrot.slane %v1388, 1
    %v1390 = vmax.f32 %v1388, %v1389
    %v1407 = vrot.slane %v774, 1
    %v1408 = vrot.slane %v780, 1
    %v1409 = vsel %vm1029, %v1407, %v1408
    %v1410 = vrot.slane %v786, 1
    %v1411 = vrot.slane %v792, 1
    %v1412 = vsel %vm1029, %v1410, %v1411
    %v1413 = vrot.slane %v798, 1
    %v1414 = vrot.slane %v804, 1
    %v1415 = vsel %vm1029, %v1413, %v1414
    %v1416 = vrot.slane %v810, 1
    %v1417 = vrot.slane %v816, 1
    %v1418 = vsel %vm1029, %v1416, %v1417
    %v1419 = vrot.slane %v822, 1
    %v1420 = vrot.slane %v828, 1
    %v1421 = vsel %vm1029, %v1419, %v1420
    %v1422 = vrot.slane %v834, 1
    %v1423 = vrot.slane %v840, 1
    %v1424 = vsel %vm1029, %v1422, %v1423
    %v1425 = vrot.slane %v846, 1
    %v1426 = vrot.slane %v852, 1
    %v1427 = vsel %vm1029, %v1425, %v1426
    %v1428 = vrot.slane %v858, 1
    %v1429 = vrot.slane %v864, 1
    %v1430 = vsel %vm1029, %v1428, %v1429
    %v1447 = vadd.f32 %v615, %v1409
    %v1448 = vadd.f32 %v621, %v1408
    %v1449 = vadd.f32 %v627, %v1412
    %v1450 = vadd.f32 %v633, %v1411
    %v1451 = vadd.f32 %v639, %v1415
    %v1452 = vadd.f32 %v645, %v1414
    %v1453 = vadd.f32 %v651, %v1418
    %v1454 = vadd.f32 %v657, %v1417
    %v1455 = vadd.f32 %v663, %v1421
    %v1456 = vadd.f32 %v669, %v1420
    %v1457 = vadd.f32 %v675, %v1424
    %v1458 = vadd.f32 %v681, %v1423
    %v1459 = vadd.f32 %v687, %v1427
    %v1460 = vadd.f32 %v693, %v1426
    %v1461 = vadd.f32 %v699, %v1430
    %v1462 = vadd.f32 %v705, %v1429
    %v1479 = vrot.slane %v776, 2
    %v1480 = vrot.slane %v782, 2
    %v1481 = vsel %vm1254, %v1479, %v1480
    %v1482 = vrot.slane %v788, 2
    %v1483 = vrot.slane %v794, 2
    %v1484 = vsel %vm1254, %v1482, %v1483
    %v1485 = vrot.slane %v800, 2
    %v1486 = vrot.slane %v806, 2
    %v1487 = vsel %vm1254, %v1485, %v1486
    %v1488 = vrot.slane %v812, 2
    %v1489 = vrot.slane %v818, 2
    %v1490 = vsel %vm1254, %v1488, %v1489
    %v1491 = vrot.slane %v824, 2
    %v1492 = vrot.slane %v830, 2
    %v1493 = vsel %vm1254, %v1491, %v1492
    %v1494 = vrot.slane %v836, 2
    %v1495 = vrot.slane %v842, 2
    %v1496 = vsel %vm1254, %v1494, %v1495
    %v1497 = vrot.slane %v848, 2
    %v1498 = vrot.slane %v854, 2
    %v1499 = vsel %vm1254, %v1497, %v1498
    %v1500 = vrot.slane %v860, 2
    %v1501 = vrot.slane %v866, 2
    %v1502 = vsel %vm1254, %v1500, %v1501
    %v1519 = vadd.f32 %v1447, %v1481
    %v1520 = vadd.f32 %v1448, %v1480
    %v1521 = vadd.f32 %v1449, %v1484
    %v1522 = vadd.f32 %v1450, %v1483
    %v1523 = vadd.f32 %v1451, %v1487
    %v1524 = vadd.f32 %v1452, %v1486
    %v1525 = vadd.f32 %v1453, %v1490
    %v1526 = vadd.f32 %v1454, %v1489
    %v1527 = vadd.f32 %v1455, %v1493
    %v1528 = vadd.f32 %v1456, %v1492
    %v1529 = vadd.f32 %v1457, %v1496
    %v1530 = vadd.f32 %v1458, %v1495
    %v1531 = vadd.f32 %v1459, %v1499
    %v1532 = vadd.f32 %v1460, %v1498
    %v1533 = vadd.f32 %v1461, %v1502
    %v1534 = vadd.f32 %v1462, %v1501
    %vm1551 = vcmask 1044480
    %v1552 = vrot.slane %v935, 3
    %v1553 = vrot.slane %v940, 3
    %v1554 = vsel %vm1551, %v1552, %v1553
    %v1555 = vrot.slane %v945, 3
    %v1556 = vrot.slane %v950, 3
    %v1557 = vsel %vm1551, %v1555, %v1556
    %v1558 = vrot.slane %v955, 3
    %v1559 = vrot.slane %v960, 3
    %v1560 = vsel %vm1551, %v1558, %v1559
    %v1561 = vrot.slane %v965, 3
    %v1562 = vrot.slane %v970, 3
    %v1563 = vsel %vm1551, %v1561, %v1562
    %v1564 = vrot.slane %v975, 3
    %v1565 = vrot.slane %v980, 3
    %v1566 = vsel %vm1551, %v1564, %v1565
    %v1567 = vrot.slane %v985, 3
    %v1568 = vrot.slane %v990, 3
    %v1569 = vsel %vm1551, %v1567, %v1568
    %v1570 = vrot.slane %v995, 3
    %v1571 = vrot.slane %v1000, 3
    %v1572 = vsel %vm1551, %v1570, %v1571
    %v1573 = vrot.slane %v1005, 3
    %v1574 = vrot.slane %v1010, 3
    %v1575 = vsel %vm1551, %v1573, %v1574
    %v1592 = vadd.f32 %v1519, %v1554
    %v1593 = vadd.f32 %v1520, %v1553
    %v1594 = vadd.f32 %v1521, %v1557
    %v1595 = vadd.f32 %v1522, %v1556
    %v1596 = vadd.f32 %v1523, %v1560
    %v1597 = vadd.f32 %v1524, %v1559
    %v1598 = vadd.f32 %v1525, %v1563
    %v1599 = vadd.f32 %v1526, %v1562
    %v1600 = vadd.f32 %v1527, %v1566
    %v1601 = vadd.f32 %v1528, %v1565
    %v1602 = vadd.f32 %v1529, %v1569
    %v1603 = vadd.f32 %v1530, %v1568
    %v1604 = vadd.f32 %v1531, %v1572
    %v1605 = vadd.f32 %v1532, %v1571
    %v1606 = vadd.f32 %v1533, %v1575
    %v1607 = vadd.f32 %v1534, %v1574
    %v1608 = vmax.f32 %v1592, 0.0
    %v1609 = vmax.f32 %v1593, 0.0
    %v1610 = vmax.f32 %v1594, 0.0
    %v1611 = vmax.f32 %v1595, 0.0
    %v1612 = vmax.f32 %v1596, 0.0
    %v1613 = vmax.f32 %v1597, 0.0
    %v1614 = vmax.f32 %v1598, 0.0
    %v1615 = vmax.f32 %v1599, 0.0
    %v1616 = vmax.f32 %v1600, 0.0
    %v1617 = vmax.f32 %v1601, 0.0
    %v1618 = vmax.f32 %v1602, 0.0
    %v1619 = vmax.f32 %v1603, 0.0
    %v1620 = vmax.f32 %v1604, 0.0
    %v1621 = vmax.f32 %v1605, 0.0
    %v1622 = vmax.f32 %v1606, 0.0
    %v1623 = vmax.f32 %v1607, 0.0
    %v1624 = vsel %vm1551, %v1609, -inf
    %v1625 = vmax.f32 %v1608, %v1624
    %v1626 = vrot.slane %v1625, 4
    %v1627 = vmax.f32 %v1625, %v1626
    %v1628 = vrot.slane %v1627, 2
    %v1629 = vmax.f32 %v1627, %v1628
    %v1630 = vrot.slane %v1629, 1
    %v1631 = vmax.f32 %v1629, %v1630
    %v1632 = vsel %vm1551, %v1611, -inf
    %v1633 = vmax.f32 %v1610, %v1632
    %v1634 = vrot.slane %v1633, 4
    %v1635 = vmax.f32 %v1633, %v1634
    %v1636 = vrot.slane %v1635, 2
    %v1637 = vmax.f32 %v1635, %v1636
    %v1638 = vrot.slane %v1637, 1
    %v1639 = vmax.f32 %v1637, %v1638
    %v1640 = vsel %vm1551, %v1613, -inf
    %v1641 = vmax.f32 %v1612, %v1640
    %v1642 = vrot.slane %v1641, 4
    %v1643 = vmax.f32 %v1641, %v1642
    %v1644 = vrot.slane %v1643, 2
    %v1645 = vmax.f32 %v1643, %v1644
    %v1646 = vrot.slane %v1645, 1
    %v1647 = vmax.f32 %v1645, %v1646
    %v1648 = vsel %vm1551, %v1615, -inf
    %v1649 = vmax.f32 %v1614, %v1648
    %v1650 = vrot.slane %v1649, 4
    %v1651 = vmax.f32 %v1649, %v1650
    %v1652 = vrot.slane %v1651, 2
    %v1653 = vmax.f32 %v1651, %v1652
    %v1654 = vrot.slane %v1653, 1
    %v1655 = vmax.f32 %v1653, %v1654
    %v1656 = vsel %vm1551, %v1617, -inf
    %v1657 = vmax.f32 %v1616, %v1656
    %v1658 = vrot.slane %v1657, 4
    %v1659 = vmax.f32 %v1657, %v1658
    %v1660 = vrot.slane %v1659, 2
    %v1661 = vmax.f32 %v1659, %v1660
    %v1662 = vrot.slane %v1661, 1
    %v1663 = vmax.f32 %v1661, %v1662
    %v1664 = vsel %vm1551, %v1619, -inf
    %v1665 = vmax.f32 %v1618, %v1664
    %v1666 = vrot.slane %v1665, 4
    %v1667 = vmax.f32 %v1665, %v1666
    %v1668 = vrot.slane %v1667, 2
    %v1669 = vmax.f32 %v1667, %v1668
    %v1670 = vrot.slane %v1669, 1
    %v1671 = vmax.f32 %v1669, %v1670
    %v1672 = vsel %vm1551, %v1621, -inf
    %v1673 = vmax.f32 %v1620, %v1672
    %v1674 = vrot.slane %v1673, 4
    %v1675 = vmax.f32 %v1673, %v1674
    %v1676 = vrot.slane %v1675, 2
    %v1677 = vmax.f32 %v1675, %v1676
    %v1678 = vrot.slane %v1677, 1
    %v1679 = vmax.f32 %v1677, %v1678
    %v1680 = vsel %vm1551, %v1623, -inf
    %v1681 = vmax.f32 %v1622, %v1680
    %v1682 = vrot.slane %v1681, 4
    %v1683 = vmax.f32 %v1681, %v1682
    %v1684 = vrot.slane %v1683, 2
    %v1685 = vmax.f32 %v1683, %v1684
    %v1686 = vrot.slane %v1685, 1
    %v1687 = vmax.f32 %v1685, %v1686
    %vm1696 = vcmask 1041409
    %v1697 = vsel %vm1696, %v1117, %v1109
    %vm1698 = vcmask 1042434
    %v1699 = vsel %vm1698, %v1125, %v1697
    %vm1700 = vcmask 1043459
    %v1701 = vsel %vm1700, %v1133, %v1699
    %vm1702 = vcmask 1044484
    %v1703 = vsel %vm1702, %v1141, %v1701
    %vm1704 = vcmask 1045509
    %v1705 = vsel %vm1704, %v1149, %v1703
    %vm1706 = vcmask 1046534
    %v1707 = vsel %vm1706, %v1157, %v1705
    %vm1708 = vcmask 1047559
    %v1709 = vsel %vm1708, %v1165, %v1707
    %v1719 = vsel %vm1696, %v1342, %v1334
    %v1720 = vsel %vm1698, %v1350, %v1719
    %v1721 = vsel %vm1700, %v1358, %v1720
    %v1722 = vsel %vm1702, %v1366, %v1721
    %v1723 = vsel %vm1704, %v1374, %v1722
    %v1724 = vsel %vm1706, %v1382, %v1723
    %v1725 = vsel %vm1708, %v1390, %v1724
    %v1735 = vsel %vm1696, %v1639, %v1631
    %v1736 = vsel %vm1698, %v1647, %v1735
    %v1737 = vsel %vm1700, %v1655, %v1736
    %v1738 = vsel %vm1702, %v1663, %v1737
    %v1739 = vsel %vm1704, %v1671, %v1738
    %v1740 = vsel %vm1706, %v1679, %v1739
    %v1741 = vsel %vm1708, %v1687, %v1740
    %v1743 = vld [vmem:[#allocation8] sm:$0xff]
    %v1744 = vld [vmem:[#allocation8 + $0x8] sm:$0xff]
    %v1745 = vld [vmem:[#allocation8 + $0x10] sm:$0xff]
    %v1746 = vld [vmem:[#allocation8 + $0x18] sm:$0xff]
    %v1747 = vld [vmem:[#allocation8 + $0x20] sm:$0xff]
    %v1748 = vld [vmem:[#allocation8 + $0x28] sm:$0xff]
    %v1749 = vld [vmem:[#allocation8 + $0x30] sm:$0xff]
    %v1750 = vld [vmem:[#allocation8 + $0x38] sm:$0xff]
    %v1751 = vld [vmem:[#allocation8 + $0x40] sm:$0xff]
    %v1752 = vld [vmem:[#allocation8 + $0x48] sm:$0xff]
    %v1753 = vld [vmem:[#allocation8 + $0x50] sm:$0xff]
    %v1754 = vld [vmem:[#allocation8 + $0x58] sm:$0xff]
    %v1755 = vld [vmem:[#allocation8 + $0x60] sm:$0xff]
    %v1756 = vld [vmem:[#allocation8 + $0x68] sm:$0xff]
    %v1757 = vld [vmem:[#allocation8 + $0x70] sm:$0xff]
    %v1758 = vld [vmem:[#allocation8 + $0x78] sm:$0xff]
    %v1759 = vld [vmem:[#allocation8 + $0x80] sm:$0xff]
    %v1760 = vld [vmem:[#allocation8 + $0x88] sm:$0xff]
    %v1761 = vld [vmem:[#allocation8 + $0x90] sm:$0xff]
    %v1762 = vld [vmem:[#allocation8 + $0x98] sm:$0xff]
    %v1763 = vld [vmem:[#allocation8 + $0xa0] sm:$0xff]
    %v1764 = vld [vmem:[#allocation8 + $0xa8] sm:$0xff]
    %v1765 = vld [vmem:[#allocation8 + $0xb0] sm:$0xff]
    %v1766 = vld [vmem:[#allocation8 + $0xb8] sm:$0xff]
    %v1767 = vld [vmem:[#allocation8 + $0xc0] sm:$0xff]
    %v1768 = vld [vmem:[#allocation8 + $0xc8] sm:$0xff]
    %v1769 = vld [vmem:[#allocation8 + $0xd0] sm:$0xff]
    %v1770 = vld [vmem:[#allocation8 + $0xd8] sm:$0xff]
    %v1771 = vld [vmem:[#allocation8 + $0xe0] sm:$0xff]
    %v1772 = vld [vmem:[#allocation8 + $0xe8] sm:$0xff]
    %v1773 = vld [vmem:[#allocation8 + $0xf0] sm:$0xff]
    %v1774 = vld [vmem:[#allocation8 + $0xf8] sm:$0xff]
    %v1775 = vld [vmem:[#allocation8 + $0x100] sm:$0xff]
    %v1776 = vld [vmem:[#allocation8 + $0x108] sm:$0xff]
    %v1777 = vld [vmem:[#allocation8 + $0x110] sm:$0xff]
    %v1778 = vld [vmem:[#allocation8 + $0x118] sm:$0xff]
    %v1779 = vld [vmem:[#allocation8 + $0x120] sm:$0xff]
    %v1780 = vld [vmem:[#allocation8 + $0x128] sm:$0xff]
    %v1781 = vld [vmem:[#allocation8 + $0x130] sm:$0xff]
    %v1782 = vld [vmem:[#allocation8 + $0x138] sm:$0xff]
    %v1783 = vld [vmem:[#allocation8 + $0x140] sm:$0xff]
    %v1784 = vld [vmem:[#allocation8 + $0x148] sm:$0xff]
    %v1785 = vld [vmem:[#allocation8 + $0x150] sm:$0xff]
    %v1786 = vld [vmem:[#allocation8 + $0x158] sm:$0xff]
    %v1787 = vld [vmem:[#allocation8 + $0x160] sm:$0xff]
    %v1788 = vld [vmem:[#allocation8 + $0x168] sm:$0xff]
    %v1789 = vld [vmem:[#allocation8 + $0x170] sm:$0xff]
    %v1790 = vld [vmem:[#allocation8 + $0x178] sm:$0xff]
    %v1791 = vld [vmem:[%s4] sm:$0x1]
    %v1793 = vlaneseq
    %v1794 = vshrl.u32 %v1793, 7
    %v1795 = vsub.s32 0, %v1794
    %v1796 = vrot.slane %v1791, %v1795
    %1798 = vmatprep.subr.mxu0 0.0
    %1799 = vmatpush1.msra.mxu0 %v1743
    %1800 = vmatprep.subr.mxu0 0.0
    %1801 = vmatpush1.msra.mxu0 %v1744
    %1802 = vmatprep.subr.mxu0 0.0
    %1803 = vmatpush1.msra.mxu0 %v1745
    %1804 = vmatprep.subr.mxu0 0.0
    %1805 = vmatpush1.msra.mxu0 %v1746
    %1806 = vmatprep.subr.mxu0 0.0
    %1807 = vmatpush1.msra.mxu0 %v1747
    %1808 = vmatprep.subr.mxu0 0.0
    %1809 = vmatpush1.msra.mxu0 %v1748
    %1810 = vmatprep.subr.mxu0 0.0
    %1811 = vmatpush1.msra.mxu0 %v1749
    %1812 = vmatprep.subr.mxu0 0.0
    %1813 = vmatpush1.msra.mxu0 %v1750
    %1814 = vmatprep.subr.mxu0 0.0
    %1815 = vmatpush1.msra.mxu0 %v1751
    %1816 = vmatprep.subr.mxu0 0.0
    %1817 = vmatpush1.msra.mxu0 %v1752
    %1818 = vmatprep.subr.mxu0 0.0
    %1819 = vmatpush1.msra.mxu0 %v1753
    %1820 = vmatprep.subr.mxu0 0.0
    %1821 = vmatpush1.msra.mxu0 %v1754
    %1822 = vmatprep.subr.mxu0 0.0
    %1823 = vmatpush1.msra.mxu0 %v1755
    %1824 = vmatprep.subr.mxu0 0.0
    %1825 = vmatpush1.msra.mxu0 %v1756
    %1826 = vmatprep.subr.mxu0 0.0
    %1827 = vmatpush1.msra.mxu0 %v1757
    %1828 = vmatprep.subr.mxu0 0.0
    %1829 = vmatpush1.msra.mxu0 %v1758
    %1830 = vmatprep.subr.mxu0 0.0
    %1831 = vmatpush1.msra.mxu0 %v1759
    %1832 = vmatprep.subr.mxu0 0.0
    %1833 = vmatpush1.msra.mxu0 %v1760
    %1834 = vmatprep.subr.mxu0 0.0
    %1835 = vmatpush1.msra.mxu0 %v1761
    %1836 = vmatprep.subr.mxu0 0.0
    %1837 = vmatpush1.msra.mxu0 %v1762
    %1838 = vmatprep.subr.mxu0 0.0
    %1839 = vmatpush1.msra.mxu0 %v1763
    %1840 = vmatprep.subr.mxu0 0.0
    %1841 = vmatpush1.msra.mxu0 %v1764
    %1842 = vmatprep.subr.mxu0 0.0
    %1843 = vmatpush1.msra.mxu0 %v1765
    %1844 = vmatprep.subr.mxu0 0.0
    %1845 = vmatpush1.msra.mxu0 %v1766
    %1846 = vmatprep.subr.mxu0 0.0
    %1847 = vmatpush1.msra.mxu0 %v1767
    %1848 = vmatprep.subr.mxu0 0.0
    %1849 = vmatpush1.msra.mxu0 %v1768
    %1850 = vmatprep.subr.mxu0 0.0
    %1851 = vmatpush1.msra.mxu0 %v1769
    %1852 = vmatprep.subr.mxu0 0.0
    %1853 = vmatpush1.msra.mxu0 %v1770
    %1854 = vmatprep.subr.mxu0 0.0
    %1855 = vmatpush1.msra.mxu0 %v1771
    %1856 = vmatprep.subr.mxu0 0.0
    %1857 = vmatpush1.msra.mxu0 %v1772
    %1858 = vmatprep.subr.mxu0 0.0
    %1859 = vmatpush1.msra.mxu0 %v1773
    %1860 = vmatprep.subr.mxu0 0.0
    %1861 = vmatpush1.msra.mxu0 %v1774
    %1862 = vmatprep.mubr.f32.mxu0 %v1725
    %1863 = vmatmul.mubr.f32.gmra.mrb[0].mxu0 %v1709
    %v1864 = vpop.f32.mrb[0].mxu0
    %v1865 = vadd.f32 %v1796, %v1864
    %v1866 = vpop.f32.mrb[0].mxu0
    %1867 = vdwg.mxu0
    %1868 = vmatprep.subr.mxu0 0.0
    %1869 = vmatpush1.msra.mxu0 %v1775
    %1870 = vmatprep.subr.mxu0 0.0
    %1871 = vmatpush1.msra.mxu0 %v1776
    %1872 = vmatprep.subr.mxu0 0.0
    %1873 = vmatpush1.msra.mxu0 %v1777
    %1874 = vmatprep.subr.mxu0 0.0
    %1875 = vmatpush1.msra.mxu0 %v1778
    %1876 = vmatprep.subr.mxu0 0.0
    %1877 = vmatpush1.msra.mxu0 %v1779
    %1878 = vmatprep.subr.mxu0 0.0
    %1879 = vmatpush1.msra.mxu0 %v1780
    %1880 = vmatprep.subr.mxu0 0.0
    %1881 = vmatpush1.msra.mxu0 %v1781
    %1882 = vmatprep.subr.mxu0 0.0
    %1883 = vmatpush1.msra.mxu0 %v1782
    %1884 = vmatprep.subr.mxu0 0.0
    %1885 = vmatpush1.msra.mxu0 %v1783
    %1886 = vmatprep.subr.mxu0 0.0
    %1887 = vmatpush1.msra.mxu0 %v1784
    %1888 = vmatprep.subr.mxu0 0.0
    %1889 = vmatpush1.msra.mxu0 %v1785
    %1890 = vmatprep.subr.mxu0 0.0
    %1891 = vmatpush1.msra.mxu0 %v1786
    %1892 = vmatprep.subr.mxu0 0.0
    %1893 = vmatpush1.msra.mxu0 %v1787
    %1894 = vmatprep.subr.mxu0 0.0
    %1895 = vmatpush1.msra.mxu0 %v1788
    %1896 = vmatprep.subr.mxu0 0.0
    %1897 = vmatpush1.msra.mxu0 %v1789
    %1898 = vmatprep.subr.mxu0 0.0
    %1899 = vmatpush1.msra.mxu0 %v1790
    %1900 = vmatprep.subr.mxu0 0.0
    %1901 = vmatpush1.msra.mxu0 0.0
    %1902 = vmatprep.subr.mxu0 0.0
    %1903 = vmatpush1.msra.mxu0 0.0
    %1904 = vmatprep.subr.mxu0 0.0
    %1905 = vmatpush1.msra.mxu0 0.0
    %1906 = vmatprep.subr.mxu0 0.0
    %1907 = vmatpush1.msra.mxu0 0.0
    %1908 = vmatprep.subr.mxu0 0.0
    %1909 = vmatpush1.msra.mxu0 0.0
    %1910 = vmatprep.subr.mxu0 0.0
    %1911 = vmatpush1.msra.mxu0 0.0
    %1912 = vmatprep.subr.mxu0 0.0
    %1913 = vmatpush1.msra.mxu0 0.0
    %1914 = vmatprep.subr.mxu0 0.0
    %1915 = vmatpush1.msra.mxu0 0.0
    %1916 = vmatprep.subr.mxu0 0.0
    %1917 = vmatpush1.msra.mxu0 0.0
    %1918 = vmatprep.subr.mxu0 0.0
    %1919 = vmatpush1.msra.mxu0 0.0
    %1920 = vmatprep.subr.mxu0 0.0
    %1921 = vmatpush1.msra.mxu0 0.0
    %1922 = vmatprep.subr.mxu0 0.0
    %1923 = vmatpush1.msra.mxu0 0.0
    %1924 = vmatprep.subr.mxu0 0.0
    %1925 = vmatpush1.msra.mxu0 0.0
    %1926 = vmatprep.subr.mxu0 0.0
    %1927 = vmatpush1.msra.mxu0 0.0
    %1928 = vmatprep.subr.mxu0 0.0
    %1929 = vmatpush1.msra.mxu0 0.0
    %1930 = vmatprep.subr.mxu0 0.0
    %1931 = vmatpush1.msra.mxu0 0.0
    %1932 = vmatprep.mubr.f32.mxu0 0.0
    %1933 = vmatmul.mubr.f32.gmra.mrb[0].mxu0 %v1741
    %v1934 = vpop.f32.mrb[0].mxu0
    %v1935 = vadd.f32 %v1865, %v1934
    %v1936 = vpop.f32.mrb[0].mxu0
    %1937 = vdwg.mxu0
    %1938 = vmax.xlane.f32.xlu0 %v1935
    %v1939 = vpop.xlane.xlu0 %1938
    %v1940 = vsub.f32 %v1935, %v1939
    %v1941 = vmul.f32 %v1940, 1.442695
    %v1942 = vpow.pop %v1941
    %1943 = vadd.xlane.f32.xlu0 %v1942
    %v1944 = vpop.xlane.xlu0 %1943
    %v1945 = vlog2.pop %v1944
    %v1946 = vmul.f32 %v1945, 0.6931472
    %v1947 = vsub.f32 %v1940, %v1946
    %1948 = vst [vmem:[#allocation10] sm:$0xff] %v1947
    // Predicated region
    $region38: #{tpu_custom_call.1} parent=1 // pred_check
      _
    $region39: #{tpu_custom_call.1} parent=1 // pred_check_branch
      %1950 = sbr.rel (0) target = $region41
    $region40: #{tpu_custom_call.1} parent=1 // pred_region
      %s1952 = ssub.s32 128, 128
      %1953 = vsyncadd [#allocation4], %s1952
      %s1955 = sshll.u32 [#allocation10], 4
      %s1956 = int_to_ptr.vmem [resolvable:$true] %s1955
      %1958 = dma.vmem_to_hbm [thread:$0]  %s1956, 128, %s5, [#allocation4]
    $region41: #{tpu_custom_call.1} parent=1 // pred_fallthru
      _
    // Predicated region
    $region42: #{tpu_custom_call.1} parent=1 // pred_check
      _
    $region43: #{tpu_custom_call.1} parent=1 // pred_check_branch
      %1960 = sbr.rel (0) target = $region45
    $region44: #{tpu_custom_call.1} parent=1 // pred_region
      %1961 = dma.done [#allocation4], 128
    $region45: #{tpu_custom_call.1} parent=1 // pred_fallthru
      _
    %1962 = vsyncpa [#allocation3], 1
    %1963 = vsyncpa [#allocation6], 1
    %1964 = vsyncpa [#allocation9], 1
    %1965 = vsyncpa [#allocation4], 1

</llo_original>
